<compile_context>
chip_gen: v5e
topology: v5e:2x2
jax: 0.10.0
libtpu: 0.0.40
codegen_flags: <defaults>
</compile_context>

<pallas_src>
import functools

import jax
import jax.numpy as jnp
from jax.experimental import pallas as pl
from jax.experimental.pallas import tpu as pltpu

LN_EPS = 1e-5
_TB_MAX = 512            # max batch-tile rows per grid step
_UNROLL_MAX_LAYERS = 8   # fully unroll the DNN stack only up to this depth


# --------------------------------------------------------------------------
# Small helpers
# --------------------------------------------------------------------------
def _round_up(n, m):
    return -(-n // m) * m


def _pad_to(a, shape):
    pads = [(0, t - s) for s, t in zip(a.shape, shape)]
    if any(p for _, p in pads):
        a = jnp.pad(a, pads)
    return a


def _zeros_index_map(rank):
    return lambda i: (0,) * rank


def _pick_tb(batch):
    """Batch tile: multiple of 8 (f32 sublane); >= 2 grid steps when B >= 16
    (keeps both v7x TensorCores busy -- the extra ~0.35us/step is noise on
    single-core v5e/v6e); capped at _TB_MAX.  Prefers a tile that divides the
    8-padded batch so no padded rows are wasted."""
    b8 = _round_up(max(int(batch), 1), 8)
    if b8 <= 8:
        return 8
    target = min(_TB_MAX, _round_up(b8 // 2, 8))
    for tb in range(target, max(target // 2, 8) - 1, -8):
        if b8 % tb == 0:
            return tb
    return target


@functools.lru_cache(maxsize=None)
def _vmem_cap_bytes():
    """Generation-aware scoped-VMEM cap: ~80% of physical per-core VMEM
    (~102 MiB on v5e/v6e, ~51 MiB on v7x); conservative fallback otherwise."""
    try:
        cap = int(pltpu.get_tpu_info().vmem_capacity_bytes)
    except Exception:  # hardware query unavailable on this build/backend
        cap = 64 * 1024 * 1024
    return max(32 * 1024 * 1024, int(0.8 * cap))


def _probe_copy_kernel(a_ref, o_ref):
    o_ref[...] = a_ref[...]


@functools.lru_cache(maxsize=None)
def _single_buffer_supported():
    """Probe pl.Buffered(1) (single-buffered grid-invariant inputs) once with
    a trivial identity kernel.  The broad except is acceptable *here only*:
    this is a capability probe -- the real kernel below is never wrapped in
    try/except, so genuine compile/runtime failures surface normally."""
    try:
        spec = pl.BlockSpec((8, 128), lambda i: (0, 0),
                            pipeline_mode=pl.Buffered(1))
    except Exception:
        return False
    try:
        fn = pl.pallas_call(
            _probe_copy_kernel,
            out_shape=jax.ShapeDtypeStruct((8, 128), jnp.float32),
            grid=(1,),
            in_specs=[spec],
            out_specs=pl.BlockSpec((8, 128), lambda i: (0, 0)),
        )
        jax.block_until_ready(fn(jnp.zeros((8, 128), jnp.float32)))
        return True
    except Exception:
        return False


# --------------------------------------------------------------------------
# Kernel
# --------------------------------------------------------------------------
def _layernorm(x, gamma, beta, h_true, mask):
    """LayerNorm over the last dim.  x is (tb, H_PAD) with padded lanes == 0;
    statistics are taken over the true H lanes only (mask is None when
    H_PAD == H).  Padded gamma/beta are 0, so padded output lanes stay 0."""
    inv_h = 1.0 / h_true
    mu = jnp.sum(x, axis=-1, keepdims=True) * inv_h       # padded lanes are 0
    xc = x - mu
    xm = xc if mask is None else jnp.where(mask, xc, 0.0)
    var = jnp.sum(xm * xm, axis=-1, keepdims=True) * inv_h
    return xc * jax.lax.rsqrt(var + LN_EPS) * gamma + beta


def res_dnn_kernel(x_ref, prep_w_ref, prep_b_ref,
                   dnn_w_ref, dnn_b_ref, dnn_g_ref, dnn_bt_ref,
                   res_g_ref, res_bt_ref,
                   cls_w_ref, cls_b_ref,
                   o_ref, *, num_res, num_dnn, hidden_true, compute_dtype,
                   unroll_dnn):
    h_pad = prep_w_ref.shape[1]
    if h_pad != hidden_true:
        lane = jax.lax.broadcasted_iota(jnp.int32, (1, h_pad), 1)
        ln_mask = lane < hidden_true
    else:
        ln_mask = None

    # prepare: Linear(input_size -> hidden)
    h = jnp.dot(x_ref[...].astype(compute_dtype), prep_w_ref[...],
                preferred_element_type=jnp.float32) + prep_b_ref[...]

    def dnn_step(hh, idx):
        # DNN: Linear -> Dropout(identity, eval) -> Tanh -> LayerNorm
        y = jnp.dot(hh.astype(compute_dtype), dnn_w_ref[idx],
                    preferred_element_type=jnp.float32) + dnn_b_ref[idx]
        y = jnp.tanh(y)
        return _layernorm(y, dnn_g_ref[idx], dnn_bt_ref[idx],
                          hidden_true, ln_mask)

    for r in range(num_res):
        shortcut = h
        if unroll_dnn:
            for n in range(num_dnn):
                h = dnn_step(h, r * num_dnn + n)
        else:
            # Deep stacks: bounded live ranges, compact body.
            h = jax.lax.fori_loop(
                0, num_dnn, lambda n, hh: dnn_step(hh, r * num_dnn + n), h)
        h = jnp.tanh(shortcut + h)
        h = _layernorm(h, res_g_ref[r], res_bt_ref[r], hidden_true, ln_mask)

    # classifier: Linear(hidden -> output); output lanes padded to a multiple
    # of 128 so this store is a full, unmasked vst.
    o_ref[...] = (jnp.dot(h.astype(compute_dtype), cls_w_ref[...],
                          preferred_element_type=jnp.float32)
                  + cls_b_ref[...]).astype(o_ref.dtype)


# --------------------------------------------------------------------------
# Wrapper (built once per static config, jitted)
# --------------------------------------------------------------------------
@functools.partial(jax.jit,
                   static_argnames=("tb", "use_bf16", "single_buffer_weights"))
def _forward_jit(x, params, *, tb, use_bf16, single_buffer_weights):
    B, IN = x.shape
    H = params["prep_w"].shape[1]
    OUT = params["cls_w"].shape[1]
    R, N = params["dnn_w"].shape[:2]

    H_PAD = _round_up(H, 128)      # lane-dense hidden dim
    OUT_PAD = _round_up(OUT, 128)  # lane-dense (unmasked) output store
    B_PAD = _round_up(B, tb)       # (8,128)-aligned batch tiles, no divisor games

    w_dtype = jnp.bfloat16 if use_bf16 else jnp.float32

    # Zero-padding is matmul-exact; padded LN gamma/beta of 0 keep the padded
    # hidden lanes identically 0 through the whole stack.
    prep_w = _pad_to(params["prep_w"], (IN, H_PAD)).astype(w_dtype)
    prep_b = _pad_to(params["prep_b"], (1, H_PAD))
    dnn_w = _pad_to(params["dnn_w"], (R, N, H_PAD, H_PAD)).astype(w_dtype)
    dnn_b = _pad_to(params["dnn_b"], (R, N, 1, H_PAD))
    dnn_g = _pad_to(params["dnn_g"], (R, N, 1, H_PAD))
    dnn_bt = _pad_to(params["dnn_bt"], (R, N, 1, H_PAD))
    res_g = _pad_to(params["res_g"], (R, 1, H_PAD))
    res_bt = _pad_to(params["res_bt"], (R, 1, H_PAD))
    cls_w = _pad_to(params["cls_w"], (H_PAD, OUT_PAD)).astype(w_dtype)
    cls_b = _pad_to(params["cls_b"], (1, OUT_PAD))
    xp = _pad_to(x, (B_PAD, IN))

    # Flatten (R, N) -> R*N so the kernel indexes one (possibly dynamic)
    # leading axis.
    dnn_w = dnn_w.reshape(R * N, H_PAD, H_PAD)
    dnn_b = dnn_b.reshape(R * N, 1, H_PAD)
    dnn_g = dnn_g.reshape(R * N, 1, H_PAD)
    dnn_bt = dnn_bt.reshape(R * N, 1, H_PAD)

    # Scoped-VMEM budget: weights counted once when single-buffered, twice in
    # the double-buffered fallback; generation-aware cap.
    w_item = jnp.dtype(w_dtype).itemsize
    weight_bytes = (w_item * (IN * H_PAD + R * N * H_PAD * H_PAD
                              + H_PAD * OUT_PAD)
                    + 4 * (H_PAD + 3 * R * N * H_PAD + 2 * R * H_PAD + OUT_PAD))
    weight_factor = 1 if single_buffer_weights else 2
    act_bytes = 4 * (2 * tb * IN + 2 * tb * OUT_PAD + 8 * tb * H_PAD)
    vmem_limit = int(min(_vmem_cap_bytes(),
                         max(32 * 1024 * 1024,
                             weight_factor * weight_bytes + act_bytes)))

    kernel = functools.partial(
        res_dnn_kernel, num_res=R, num_dnn=N, hidden_true=H,
        compute_dtype=w_dtype,
        unroll_dnn=(R * N <= _UNROLL_MAX_LAYERS))

    def wspec(shape):
        # Grid-invariant weights / LN params: block index never changes, so a
        # single buffer halves their VMEM footprint (when supported).
        if single_buffer_weights:
            return pl.BlockSpec(shape, _zeros_index_map(len(shape)),
                                pipeline_mode=pl.Buffered(1))
        return pl.BlockSpec(shape, _zeros_index_map(len(shape)))

    out_pad = pl.pallas_call(
        kernel,
        out_shape=jax.ShapeDtypeStruct((B_PAD, OUT_PAD), jnp.float32),
        grid=(B_PAD // tb,),
        in_specs=[
            pl.BlockSpec((tb, IN), lambda i: (i, 0)),               # x (batch-tiled)
            wspec((IN, H_PAD)), wspec((1, H_PAD)),                  # prepare
            wspec((R * N, H_PAD, H_PAD)), wspec((R * N, 1, H_PAD)), # DNN linear
            wspec((R * N, 1, H_PAD)), wspec((R * N, 1, H_PAD)),     # DNN LayerNorm
            wspec((R, 1, H_PAD)), wspec((R, 1, H_PAD)),             # Res LayerNorm
            wspec((H_PAD, OUT_PAD)), wspec((1, OUT_PAD)),           # classifier
        ],
        out_specs=pl.BlockSpec((tb, OUT_PAD), lambda i: (i, 0)),
        compiler_params=pltpu.CompilerParams(
            dimension_semantics=("parallel",),
            vmem_limit_bytes=vmem_limit),
    )(xp, prep_w, prep_b, dnn_w, dnn_b, dnn_g, dnn_bt, res_g, res_bt,
      cls_w, cls_b)

    return out_pad[:B, :OUT]


def res_dnn_forward(x, params, *, tb=None, use_bf16_weights=False):
    """Res_DNN forward (eval mode: dropout = identity)."""
    if tb is None:
        tb = _pick_tb(x.shape[0])
    return _forward_jit(x, params, tb=int(tb),
                        use_bf16=bool(use_bf16_weights),
                        single_buffer_weights=_single_buffer_supported())


# --------------------------------------------------------------------------
# Pure-JAX reference & param init
# --------------------------------------------------------------------------
def res_dnn_reference(x, params):
    """Pure-JAX reference mirroring the PyTorch forward (eval mode)."""
    def ln(h, g, b):
        mu = jnp.mean(h, axis=-1, keepdims=True)
        var = jnp.mean((h - mu) ** 2, axis=-1, keepdims=True)
        return (h - mu) / jnp.sqrt(var + LN_EPS) * g + b

    R, N = params["dnn_w"].shape[:2]
    h = x @ params["prep_w"] + params["prep_b"]
    for r in range(R):
        shortcut = h
        for n in range(N):
            h = h @ params["dnn_w"][r, n] + params["dnn_b"][r, n]
            h = jnp.tanh(h)
            h = ln(h, params["dnn_g"][r, n], params["dnn_bt"][r, n])
        h = jnp.tanh(shortcut + h)
        h = ln(h, params["res_g"][r], params["res_bt"][r])
    return h @ params["cls_w"] + params["cls_b"]


def init_params(key, input_size, hidden_size, output_size, num_res, num_dnn):
    ks = jax.random.split(key, 6)
    s = 0.05
    return {
        "prep_w": s * jax.random.normal(ks[0], (input_size, hidden_size), jnp.float32),
        "prep_b": s * jax.random.normal(ks[1], (1, hidden_size), jnp.float32),
        "dnn_w": s * jax.random.normal(ks[2], (num_res, num_dnn, hidden_size, hidden_size), jnp.float32),
        "dnn_b": s * jax.random.normal(ks[3], (num_res, num_dnn, 1, hidden_size), jnp.float32),
        # LayerNorm params like PyTorch init (gamma=1, beta=0) plus a small
        # deterministic perturbation so the test exercises the affine path.
        "dnn_g": jnp.ones((num_res, num_dnn, 1, hidden_size), jnp.float32) + 0.01,
        "dnn_bt": jnp.full((num_res, num_dnn, 1, hidden_size), 0.02, jnp.float32),
        "res_g": jnp.ones((num_res, 1, hidden_size), jnp.float32) - 0.01,
        "res_bt": jnp.full((num_res, 1, hidden_size), -0.02, jnp.float32),
        "cls_w": s * jax.random.normal(ks[4], (hidden_size, output_size), jnp.float32),
        "cls_b": s * jax.random.normal(ks[5], (1, output_size), jnp.float32),
    }


if __name__ == "__main__":
    B, INPUT, HIDDEN, OUTPUT = 16, 48, 32, 16
    NUM_RES_DNN, NUM_DNN = 2, 2

    key = jax.random.PRNGKey(0)
    kx, kp = jax.random.split(key)
    x = jax.random.normal(kx, (B, INPUT), jnp.float32)
    params = init_params(kp, INPUT, HIDDEN, OUTPUT, NUM_RES_DNN, NUM_DNN)

    # f32 path: exact parity with the reference (tb auto-picked -> grid of 2).
    out = jax.block_until_ready(res_dnn_forward(x, params))
    ref = res_dnn_reference(x, params)
    assert out.shape == (B, OUTPUT)
    assert jnp.allclose(out, ref, atol=1e-5, rtol=1e-5), "f32 mismatch vs reference"

    # bf16-weight fast path (halved weight VMEM/HBM, native MXU dtype); looser
    # tolerance since it intentionally deviates from exact f32 parity.
    out_bf16 = jax.block_until_ready(
        res_dnn_forward(x, params, use_bf16_weights=True))
    assert jnp.allclose(out_bf16, ref, atol=1e-1, rtol=1e-1), "bf16 mismatch"

    # Deep config: exercises the lax.fori_loop (non-unrolled) path, dynamic
    # leading-axis weight indexing, and batch padding (B=2 -> padded to 8).
    kx2, kp2 = jax.random.split(jax.random.PRNGKey(1))
    x2 = jax.random.normal(kx2, (2, 24), jnp.float32)
    params2 = init_params(kp2, 24, 32, 8, 2, 5)
    out2 = jax.block_until_ready(res_dnn_forward(x2, params2))
    ref2 = res_dnn_reference(x2, params2)
    assert out2.shape == (2, 8)
    assert jnp.allclose(out2, ref2, atol=1e-5, rtol=1e-5), "deep-config mismatch"

    print("KERNEL_OK")
</pallas_src>

<mosaic_0001>
module attributes {stable_mosaic.version = 11 : i64} {
  func.func @_probe_copy_kernel(%arg0: i32, %arg1: memref<8x128xf32, #tpu.memory_space<vmem>>, %arg2: memref<8x128xf32, #tpu.memory_space<vmem>>) attributes {dimension_semantics = [#tpu.dimension_semantics<arbitrary>], iteration_bounds = array<i64: 1>, scalar_prefetch = 0 : i64, scratch_operands = 0 : i64, tpu.core_type = #tpu.core_type<tc>, window_params = [{pipeline_mode = #tpu.pipeline_mode<synchronous>, transform_indices = @transform_0, window_bounds = array<i64: 8, 128>}, {pipeline_mode = #tpu.pipeline_mode<synchronous>, transform_indices = @transform_1, window_bounds = array<i64: 8, 128>}]} {
    %c0 = arith.constant 0 : index
    %c0_0 = arith.constant 0 : index
    %0 = vector.load %arg1[%c0, %c0_0] : memref<8x128xf32, #tpu.memory_space<vmem>>, vector<8x128xf32>
    %c0_1 = arith.constant 0 : index
    %c0_2 = arith.constant 0 : index
    %1 = vector.load %arg2[%c0_1, %c0_2] : memref<8x128xf32, #tpu.memory_space<vmem>>, vector<8x128xf32>
    tpu.vector_store %arg2[%c0_1, %c0_2], %0 {strides = array<i32>} : memref<8x128xf32, #tpu.memory_space<vmem>>, vector<8x128xf32>,
    return
  }
  func.func @transform_0(%arg0: i32) -> (i32, i32) {
    %c0_i32 = arith.constant 0 : i32
    %c0_i32_0 = arith.constant 0 : i32
    %c0_i32_1 = arith.constant 0 : i32
    return %c0_i32, %c0_i32_0 : i32, i32
  }
  func.func @transform_1(%arg0: i32) -> (i32, i32) {
    %c0_i32 = arith.constant 0 : i32
    %c0_i32_0 = arith.constant 0 : i32
    %c0_i32_1 = arith.constant 0 : i32
    return %c0_i32, %c0_i32_0 : i32, i32
  }
}

module attributes {stable_mosaic.version = 11 : i64} {
  func.func @res_dnn_kernel(%arg0: i32, %arg1: memref<8x48xf32, #tpu.memory_space<vmem>>, %arg2: memref<48x128xf32, #tpu.memory_space<vmem>>, %arg3: memref<1x128xf32, #tpu.memory_space<vmem>>, %arg4: memref<4x128x128xf32, #tpu.memory_space<vmem>>, %arg5: memref<4x1x128xf32, #tpu.memory_space<vmem>>, %arg6: memref<4x1x128xf32, #tpu.memory_space<vmem>>, %arg7: memref<4x1x128xf32, #tpu.memory_space<vmem>>, %arg8: memref<2x1x128xf32, #tpu.memory_space<vmem>>, %arg9: memref<2x1x128xf32, #tpu.memory_space<vmem>>, %arg10: memref<128x128xf32, #tpu.memory_space<vmem>>, %arg11: memref<1x128xf32, #tpu.memory_space<vmem>>, %arg12: memref<8x128xf32, #tpu.memory_space<vmem>>) attributes {dimension_semantics = [#tpu.dimension_semantics<parallel>], iteration_bounds = array<i64: 2>, scalar_prefetch = 0 : i64, scratch_operands = 0 : i64, tpu.core_type = #tpu.core_type<tc>, window_params = [{transform_indices = @transform_0, window_bounds = array<i64: 8, 48>}, {pipeline_mode = #tpu.pipeline_mode<synchronous>, transform_indices = @transform_1, window_bounds = array<i64: 48, 128>}, {pipeline_mode = #tpu.pipeline_mode<synchronous>, transform_indices = @transform_2, window_bounds = array<i64: 1, 128>}, {pipeline_mode = #tpu.pipeline_mode<synchronous>, transform_indices = @transform_3, window_bounds = array<i64: 4, 128, 128>}, {pipeline_mode = #tpu.pipeline_mode<synchronous>, transform_indices = @transform_4, window_bounds = array<i64: 4, 1, 128>}, {pipeline_mode = #tpu.pipeline_mode<synchronous>, transform_indices = @transform_5, window_bounds = array<i64: 4, 1, 128>}, {pipeline_mode = #tpu.pipeline_mode<synchronous>, transform_indices = @transform_6, window_bounds = array<i64: 4, 1, 128>}, {pipeline_mode = #tpu.pipeline_mode<synchronous>, transform_indices = @transform_7, window_bounds = array<i64: 2, 1, 128>}, {pipeline_mode = #tpu.pipeline_mode<synchronous>, transform_indices = @transform_8, window_bounds = array<i64: 2, 1, 128>}, {pipeline_mode = #tpu.pipeline_mode<synchronous>, transform_indices = @transform_9, window_bounds = array<i64: 128, 128>}, {pipeline_mode = #tpu.pipeline_mode<synchronous>, transform_indices = @transform_10, window_bounds = array<i64: 1, 128>}, {transform_indices = @transform_11, window_bounds = array<i64: 8, 128>}]} {
    %0 = tpu.iota {dimensions = array<i32: 1>} : vector<1x128xi32>
    %c32_i32 = arith.constant 32 : i32
    %1 = vector.broadcast %c32_i32 : i32 to vector<1x128xi32>
    %2 = arith.cmpi slt, %0, %1 : vector<1x128xi32>
    %c0 = arith.constant 0 : index
    %c0_0 = arith.constant 0 : index
    %3 = vector.load %arg1[%c0, %c0_0] : memref<8x48xf32, #tpu.memory_space<vmem>>, vector<8x48xf32>
    %c0_1 = arith.constant 0 : index
    %c0_2 = arith.constant 0 : index
    %4 = vector.load %arg2[%c0_1, %c0_2] : memref<48x128xf32, #tpu.memory_space<vmem>>, vector<48x128xf32>
    %cst = arith.constant dense<0.000000e+00> : vector<8x128xf32>
    %5 = tpu.matmul %3, %4, %cst {dimension_numbers = #tpu.dot_dimension_numbers<[1], [0], [0], [1], [0, 0, 1, 1], [], []>} : vector<8x48xf32>, vector<48x128xf32>, vector<8x128xf32> -> vector<8x128xf32>
    %c0_3 = arith.constant 0 : index
    %c0_4 = arith.constant 0 : index
    %6 = vector.load %arg3[%c0_3, %c0_4] : memref<1x128xf32, #tpu.memory_space<vmem>>, vector<1x128xf32>
    %7 = vector.broadcast %6 : vector<1x128xf32> to vector<8x128xf32>
    %8 = arith.addf %5, %7 : vector<8x128xf32>
    %c0_5 = arith.constant 0 : index
    %c0_6 = arith.constant 0 : index
    %c0_7 = arith.constant 0 : index
    %9 = vector.load %arg4[%c0_5, %c0_6, %c0_7] : memref<4x128x128xf32, #tpu.memory_space<vmem>>, vector<1x128x128xf32>
    %10 = vector.shape_cast %9 : vector<1x128x128xf32> to vector<128x128xf32>
    %cst_8 = arith.constant dense<0.000000e+00> : vector<8x128xf32>
    %11 = tpu.matmul %8, %10, %cst_8 {dimension_numbers = #tpu.dot_dimension_numbers<[1], [0], [0], [1], [0, 0, 1, 1], [], []>} : vector<8x128xf32>, vector<128x128xf32>, vector<8x128xf32> -> vector<8x128xf32>
    %c0_9 = arith.constant 0 : index
    %c0_10 = arith.constant 0 : index
    %c0_11 = arith.constant 0 : index
    %12 = vector.load %arg5[%c0_9, %c0_10, %c0_11] : memref<4x1x128xf32, #tpu.memory_space<vmem>>, vector<1x1x128xf32>
    %13 = vector.shape_cast %12 : vector<1x1x128xf32> to vector<1x128xf32>
    %14 = vector.broadcast %13 : vector<1x128xf32> to vector<8x128xf32>
    %15 = arith.addf %11, %14 : vector<8x128xf32>
    %16 = math.tanh %15 : vector<8x128xf32>
    %c0_12 = arith.constant 0 : index
    %c0_13 = arith.constant 0 : index
    %c0_14 = arith.constant 0 : index
    %17 = vector.load %arg6[%c0_12, %c0_13, %c0_14] : memref<4x1x128xf32, #tpu.memory_space<vmem>>, vector<1x1x128xf32>
    %18 = vector.shape_cast %17 : vector<1x1x128xf32> to vector<1x128xf32>
    %c0_15 = arith.constant 0 : index
    %c0_16 = arith.constant 0 : index
    %c0_17 = arith.constant 0 : index
    %19 = vector.load %arg7[%c0_15, %c0_16, %c0_17] : memref<4x1x128xf32, #tpu.memory_space<vmem>>, vector<1x1x128xf32>
    %20 = vector.shape_cast %19 : vector<1x1x128xf32> to vector<1x128xf32>
    %cst_18 = arith.constant dense<0.000000e+00> : vector<8xf32>
    %21 = vector.multi_reduction <add>, %16, %cst_18 [1] : vector<8x128xf32> to vector<8xf32>
    %22 = vector.shape_cast %21 : vector<8xf32> to vector<8x1xf32>
    %cst_19 = arith.constant 3.125000e-02 : f32
    %23 = vector.broadcast %cst_19 : f32 to vector<8x1xf32>
    %24 = arith.mulf %22, %23 : vector<8x1xf32>
    %25 = vector.broadcast %24 : vector<8x1xf32> to vector<8x128xf32>
    %26 = arith.subf %16, %25 : vector<8x128xf32>
    %cst_20 = arith.constant 0.000000e+00 : f32
    %27 = vector.shape_cast %2 : vector<1x128xi1> to vector<1x128xi1>
    %28 = vector.broadcast %27 : vector<1x128xi1> to vector<8x128xi1>
    %29 = vector.broadcast %cst_20 : f32 to vector<8x128xf32>
    %30 = arith.select %28, %26, %29 : vector<8x128xi1>, vector<8x128xf32>
    %31 = arith.mulf %30, %30 : vector<8x128xf32>
    %cst_21 = arith.constant dense<0.000000e+00> : vector<8xf32>
    %32 = vector.multi_reduction <add>, %31, %cst_21 [1] : vector<8x128xf32> to vector<8xf32>
    %33 = vector.shape_cast %32 : vector<8xf32> to vector<8x1xf32>
    %cst_22 = arith.constant 3.125000e-02 : f32
    %34 = vector.broadcast %cst_22 : f32 to vector<8x1xf32>
    %35 = arith.mulf %33, %34 : vector<8x1xf32>
    %cst_23 = arith.constant 9.99999974E-6 : f32
    %36 = vector.broadcast %cst_23 : f32 to vector<8x1xf32>
    %37 = arith.addf %35, %36 : vector<8x1xf32>
    %38 = math.rsqrt %37 : vector<8x1xf32>
    %39 = vector.broadcast %38 : vector<8x1xf32> to vector<8x128xf32>
    %40 = arith.mulf %26, %39 : vector<8x128xf32>
    %41 = vector.broadcast %18 : vector<1x128xf32> to vector<8x128xf32>
    %42 = arith.mulf %40, %41 : vector<8x128xf32>
    %43 = vector.broadcast %20 : vector<1x128xf32> to vector<8x128xf32>
    %44 = arith.addf %42, %43 : vector<8x128xf32>
    %c1 = arith.constant 1 : index
    %c0_24 = arith.constant 0 : index
    %c0_25 = arith.constant 0 : index
    %45 = vector.load %arg4[%c1, %c0_24, %c0_25] : memref<4x128x128xf32, #tpu.memory_space<vmem>>, vector<1x128x128xf32>
    %46 = vector.shape_cast %45 : vector<1x128x128xf32> to vector<128x128xf32>
    %cst_26 = arith.constant dense<0.000000e+00> : vector<8x128xf32>
    %47 = tpu.matmul %44, %46, %cst_26 {dimension_numbers = #tpu.dot_dimension_numbers<[1], [0], [0], [1], [0, 0, 1, 1], [], []>} : vector<8x128xf32>, vector<128x128xf32>, vector<8x128xf32> -> vector<8x128xf32>
    %c1_27 = arith.constant 1 : index
    %c0_28 = arith.constant 0 : index
    %c0_29 = arith.constant 0 : index
    %48 = vector.load %arg5[%c1_27, %c0_28, %c0_29] : memref<4x1x128xf32, #tpu.memory_space<vmem>>, vector<1x1x128xf32>
    %49 = vector.shape_cast %48 : vector<1x1x128xf32> to vector<1x128xf32>
    %50 = vector.broadcast %49 : vector<1x128xf32> to vector<8x128xf32>
    %51 = arith.addf %47, %50 : vector<8x128xf32>
    %52 = math.tanh %51 : vector<8x128xf32>
    %c1_30 = arith.constant 1 : index
    %c0_31 = arith.constant 0 : index
    %c0_32 = arith.constant 0 : index
    %53 = vector.load %arg6[%c1_30, %c0_31, %c0_32] : memref<4x1x128xf32, #tpu.memory_space<vmem>>, vector<1x1x128xf32>
    %54 = vector.shape_cast %53 : vector<1x1x128xf32> to vector<1x128xf32>
    %c1_33 = arith.constant 1 : index
    %c0_34 = arith.constant 0 : index
    %c0_35 = arith.constant 0 : index
    %55 = vector.load %arg7[%c1_33, %c0_34, %c0_35] : memref<4x1x128xf32, #tpu.memory_space<vmem>>, vector<1x1x128xf32>
    %56 = vector.shape_cast %55 : vector<1x1x128xf32> to vector<1x128xf32>
    %cst_36 = arith.constant dense<0.000000e+00> : vector<8xf32>
    %57 = vector.multi_reduction <add>, %52, %cst_36 [1] : vector<8x128xf32> to vector<8xf32>
    %58 = vector.shape_cast %57 : vector<8xf32> to vector<8x1xf32>
    %cst_37 = arith.constant 3.125000e-02 : f32
    %59 = vector.broadcast %cst_37 : f32 to vector<8x1xf32>
    %60 = arith.mulf %58, %59 : vector<8x1xf32>
    %61 = vector.broadcast %60 : vector<8x1xf32> to vector<8x128xf32>
    %62 = arith.subf %52, %61 : vector<8x128xf32>
    %cst_38 = arith.constant 0.000000e+00 : f32
    %63 = vector.shape_cast %2 : vector<1x128xi1> to vector<1x128xi1>
    %64 = vector.broadcast %63 : vector<1x128xi1> to vector<8x128xi1>
    %65 = vector.broadcast %cst_38 : f32 to vector<8x128xf32>
    %66 = arith.select %64, %62, %65 : vector<8x128xi1>, vector<8x128xf32>
    %67 = arith.mulf %66, %66 : vector<8x128xf32>
    %cst_39 = arith.constant dense<0.000000e+00> : vector<8xf32>
    %68 = vector.multi_reduction <add>, %67, %cst_39 [1] : vector<8x128xf32> to vector<8xf32>
    %69 = vector.shape_cast %68 : vector<8xf32> to vector<8x1xf32>
    %cst_40 = arith.constant 3.125000e-02 : f32
    %70 = vector.broadcast %cst_40 : f32 to vector<8x1xf32>
    %71 = arith.mulf %69, %70 : vector<8x1xf32>
    %cst_41 = arith.constant 9.99999974E-6 : f32
    %72 = vector.broadcast %cst_41 : f32 to vector<8x1xf32>
    %73 = arith.addf %71, %72 : vector<8x1xf32>
    %74 = math.rsqrt %73 : vector<8x1xf32>
    %75 = vector.broadcast %74 : vector<8x1xf32> to vector<8x128xf32>
    %76 = arith.mulf %62, %75 : vector<8x128xf32>
    %77 = vector.broadcast %54 : vector<1x128xf32> to vector<8x128xf32>
    %78 = arith.mulf %76, %77 : vector<8x128xf32>
    %79 = vector.broadcast %56 : vector<1x128xf32> to vector<8x128xf32>
    %80 = arith.addf %78, %79 : vector<8x128xf32>
    %81 = arith.addf %8, %80 : vector<8x128xf32>
    %82 = math.tanh %81 : vector<8x128xf32>
    %c0_42 = arith.constant 0 : index
    %c0_43 = arith.constant 0 : index
    %c0_44 = arith.constant 0 : index
    %83 = vector.load %arg8[%c0_42, %c0_43, %c0_44] : memref<2x1x128xf32, #tpu.memory_space<vmem>>, vector<1x1x128xf32>
    %84 = vector.shape_cast %83 : vector<1x1x128xf32> to vector<1x128xf32>
    %c0_45 = arith.constant 0 : index
    %c0_46 = arith.constant 0 : index
    %c0_47 = arith.constant 0 : index
    %85 = vector.load %arg9[%c0_45, %c0_46, %c0_47] : memref<2x1x128xf32, #tpu.memory_space<vmem>>, vector<1x1x128xf32>
    %86 = vector.shape_cast %85 : vector<1x1x128xf32> to vector<1x128xf32>
    %cst_48 = arith.constant dense<0.000000e+00> : vector<8xf32>
    %87 = vector.multi_reduction <add>, %82, %cst_48 [1] : vector<8x128xf32> to vector<8xf32>
    %88 = vector.shape_cast %87 : vector<8xf32> to vector<8x1xf32>
    %cst_49 = arith.constant 3.125000e-02 : f32
    %89 = vector.broadcast %cst_49 : f32 to vector<8x1xf32>
    %90 = arith.mulf %88, %89 : vector<8x1xf32>
    %91 = vector.broadcast %90 : vector<8x1xf32> to vector<8x128xf32>
    %92 = arith.subf %82, %91 : vector<8x128xf32>
    %cst_50 = arith.constant 0.000000e+00 : f32
    %93 = vector.shape_cast %2 : vector<1x128xi1> to vector<1x128xi1>
    %94 = vector.broadcast %93 : vector<1x128xi1> to vector<8x128xi1>
    %95 = vector.broadcast %cst_50 : f32 to vector<8x128xf32>
    %96 = arith.select %94, %92, %95 : vector<8x128xi1>, vector<8x128xf32>
    %97 = arith.mulf %96, %96 : vector<8x128xf32>
    %cst_51 = arith.constant dense<0.000000e+00> : vector<8xf32>
    %98 = vector.multi_reduction <add>, %97, %cst_51 [1] : vector<8x128xf32> to vector<8xf32>
    %99 = vector.shape_cast %98 : vector<8xf32> to vector<8x1xf32>
    %cst_52 = arith.constant 3.125000e-02 : f32
    %100 = vector.broadcast %cst_52 : f32 to vector<8x1xf32>
    %101 = arith.mulf %99, %100 : vector<8x1xf32>
    %cst_53 = arith.constant 9.99999974E-6 : f32
    %102 = vector.broadcast %cst_53 : f32 to vector<8x1xf32>
    %103 = arith.addf %101, %102 : vector<8x1xf32>
    %104 = math.rsqrt %103 : vector<8x1xf32>
    %105 = vector.broadcast %104 : vector<8x1xf32> to vector<8x128xf32>
    %106 = arith.mulf %92, %105 : vector<8x128xf32>
    %107 = vector.broadcast %84 : vector<1x128xf32> to vector<8x128xf32>
    %108 = arith.mulf %106, %107 : vector<8x128xf32>
    %109 = vector.broadcast %86 : vector<1x128xf32> to vector<8x128xf32>
    %110 = arith.addf %108, %109 : vector<8x128xf32>
    %c2 = arith.constant 2 : index
    %c0_54 = arith.constant 0 : index
    %c0_55 = arith.constant 0 : index
    %111 = vector.load %arg4[%c2, %c0_54, %c0_55] : memref<4x128x128xf32, #tpu.memory_space<vmem>>, vector<1x128x128xf32>
    %112 = vector.shape_cast %111 : vector<1x128x128xf32> to vector<128x128xf32>
    %cst_56 = arith.constant dense<0.000000e+00> : vector<8x128xf32>
    %113 = tpu.matmul %110, %112, %cst_56 {dimension_numbers = #tpu.dot_dimension_numbers<[1], [0], [0], [1], [0, 0, 1, 1], [], []>} : vector<8x128xf32>, vector<128x128xf32>, vector<8x128xf32> -> vector<8x128xf32>
    %c2_57 = arith.constant 2 : index
    %c0_58 = arith.constant 0 : index
    %c0_59 = arith.constant 0 : index
    %114 = vector.load %arg5[%c2_57, %c0_58, %c0_59] : memref<4x1x128xf32, #tpu.memory_space<vmem>>, vector<1x1x128xf32>
    %115 = vector.shape_cast %114 : vector<1x1x128xf32> to vector<1x128xf32>
    %116 = vector.broadcast %115 : vector<1x128xf32> to vector<8x128xf32>
    %117 = arith.addf %113, %116 : vector<8x128xf32>
    %118 = math.tanh %117 : vector<8x128xf32>
    %c2_60 = arith.constant 2 : index
    %c0_61 = arith.constant 0 : index
    %c0_62 = arith.constant 0 : index
    %119 = vector.load %arg6[%c2_60, %c0_61, %c0_62] : memref<4x1x128xf32, #tpu.memory_space<vmem>>, vector<1x1x128xf32>
    %120 = vector.shape_cast %119 : vector<1x1x128xf32> to vector<1x128xf32>
    %c2_63 = arith.constant 2 : index
    %c0_64 = arith.constant 0 : index
    %c0_65 = arith.constant 0 : index
    %121 = vector.load %arg7[%c2_63, %c0_64, %c0_65] : memref<4x1x128xf32, #tpu.memory_space<vmem>>, vector<1x1x128xf32>
    %122 = vector.shape_cast %121 : vector<1x1x128xf32> to vector<1x128xf32>
    %cst_66 = arith.constant dense<0.000000e+00> : vector<8xf32>
    %123 = vector.multi_reduction <add>, %118, %cst_66 [1] : vector<8x128xf32> to vector<8xf32>
    %124 = vector.shape_cast %123 : vector<8xf32> to vector<8x1xf32>
    %cst_67 = arith.constant 3.125000e-02 : f32
    %125 = vector.broadcast %cst_67 : f32 to vector<8x1xf32>
    %126 = arith.mulf %124, %125 : vector<8x1xf32>
    %127 = vector.broadcast %126 : vector<8x1xf32> to vector<8x128xf32>
    %128 = arith.subf %118, %127 : vector<8x128xf32>
    %cst_68 = arith.constant 0.000000e+00 : f32
    %129 = vector.shape_cast %2 : vector<1x128xi1> to vector<1x128xi1>
    %130 = vector.broadcast %129 : vector<1x128xi1> to vector<8x128xi1>
    %131 = vector.broadcast %cst_68 : f32 to vector<8x128xf32>
    %132 = arith.select %130, %128, %131 : vector<8x128xi1>, vector<8x128xf32>
    %133 = arith.mulf %132, %132 : vector<8x128xf32>
    %cst_69 = arith.constant dense<0.000000e+00> : vector<8xf32>
    %134 = vector.multi_reduction <add>, %133, %cst_69 [1] : vector<8x128xf32> to vector<8xf32>
    %135 = vector.shape_cast %134 : vector<8xf32> to vector<8x1xf32>
    %cst_70 = arith.constant 3.125000e-02 : f32
    %136 = vector.broadcast %cst_70 : f32 to vector<8x1xf32>
    %137 = arith.mulf %135, %136 : vector<8x1xf32>
    %cst_71 = arith.constant 9.99999974E-6 : f32
    %138 = vector.broadcast %cst_71 : f32 to vector<8x1xf32>
    %139 = arith.addf %137, %138 : vector<8x1xf32>
    %140 = math.rsqrt %139 : vector<8x1xf32>
    %141 = vector.broadcast %140 : vector<8x1xf32> to vector<8x128xf32>
    %142 = arith.mulf %128, %141 : vector<8x128xf32>
    %143 = vector.broadcast %120 : vector<1x128xf32> to vector<8x128xf32>
    %144 = arith.mulf %142, %143 : vector<8x128xf32>
    %145 = vector.broadcast %122 : vector<1x128xf32> to vector<8x128xf32>
    %146 = arith.addf %144, %145 : vector<8x128xf32>
    %c3 = arith.constant 3 : index
    %c0_72 = arith.constant 0 : index
    %c0_73 = arith.constant 0 : index
    %147 = vector.load %arg4[%c3, %c0_72, %c0_73] : memref<4x128x128xf32, #tpu.memory_space<vmem>>, vector<1x128x128xf32>
    %148 = vector.shape_cast %147 : vector<1x128x128xf32> to vector<128x128xf32>
    %cst_74 = arith.constant dense<0.000000e+00> : vector<8x128xf32>
    %149 = tpu.matmul %146, %148, %cst_74 {dimension_numbers = #tpu.dot_dimension_numbers<[1], [0], [0], [1], [0, 0, 1, 1], [], []>} : vector<8x128xf32>, vector<128x128xf32>, vector<8x128xf32> -> vector<8x128xf32>
    %c3_75 = arith.constant 3 : index
    %c0_76 = arith.constant 0 : index
    %c0_77 = arith.constant 0 : index
    %150 = vector.load %arg5[%c3_75, %c0_76, %c0_77] : memref<4x1x128xf32, #tpu.memory_space<vmem>>, vector<1x1x128xf32>
    %151 = vector.shape_cast %150 : vector<1x1x128xf32> to vector<1x128xf32>
    %152 = vector.broadcast %151 : vector<1x128xf32> to vector<8x128xf32>
    %153 = arith.addf %149, %152 : vector<8x128xf32>
    %154 = math.tanh %153 : vector<8x128xf32>
    %c3_78 = arith.constant 3 : index
    %c0_79 = arith.constant 0 : index
    %c0_80 = arith.constant 0 : index
    %155 = vector.load %arg6[%c3_78, %c0_79, %c0_80] : memref<4x1x128xf32, #tpu.memory_space<vmem>>, vector<1x1x128xf32>
    %156 = vector.shape_cast %155 : vector<1x1x128xf32> to vector<1x128xf32>
    %c3_81 = arith.constant 3 : index
    %c0_82 = arith.constant 0 : index
    %c0_83 = arith.constant 0 : index
    %157 = vector.load %arg7[%c3_81, %c0_82, %c0_83] : memref<4x1x128xf32, #tpu.memory_space<vmem>>, vector<1x1x128xf32>
    %158 = vector.shape_cast %157 : vector<1x1x128xf32> to vector<1x128xf32>
    %cst_84 = arith.constant dense<0.000000e+00> : vector<8xf32>
    %159 = vector.multi_reduction <add>, %154, %cst_84 [1] : vector<8x128xf32> to vector<8xf32>
    %160 = vector.shape_cast %159 : vector<8xf32> to vector<8x1xf32>
    %cst_85 = arith.constant 3.125000e-02 : f32
    %161 = vector.broadcast %cst_85 : f32 to vector<8x1xf32>
    %162 = arith.mulf %160, %161 : vector<8x1xf32>
    %163 = vector.broadcast %162 : vector<8x1xf32> to vector<8x128xf32>
    %164 = arith.subf %154, %163 : vector<8x128xf32>
    %cst_86 = arith.constant 0.000000e+00 : f32
    %165 = vector.shape_cast %2 : vector<1x128xi1> to vector<1x128xi1>
    %166 = vector.broadcast %165 : vector<1x128xi1> to vector<8x128xi1>
    %167 = vector.broadcast %cst_86 : f32 to vector<8x128xf32>
    %168 = arith.select %166, %164, %167 : vector<8x128xi1>, vector<8x128xf32>
    %169 = arith.mulf %168, %168 : vector<8x128xf32>
    %cst_87 = arith.constant dense<0.000000e+00> : vector<8xf32>
    %170 = vector.multi_reduction <add>, %169, %cst_87 [1] : vector<8x128xf32> to vector<8xf32>
    %171 = vector.shape_cast %170 : vector<8xf32> to vector<8x1xf32>
    %cst_88 = arith.constant 3.125000e-02 : f32
    %172 = vector.broadcast %cst_88 : f32 to vector<8x1xf32>
    %173 = arith.mulf %171, %172 : vector<8x1xf32>
    %cst_89 = arith.constant 9.99999974E-6 : f32
    %174 = vector.broadcast %cst_89 : f32 to vector<8x1xf32>
    %175 = arith.addf %173, %174 : vector<8x1xf32>
    %176 = math.rsqrt %175 : vector<8x1xf32>
    %177 = vector.broadcast %176 : vector<8x1xf32> to vector<8x128xf32>
    %178 = arith.mulf %164, %177 : vector<8x128xf32>
    %179 = vector.broadcast %156 : vector<1x128xf32> to vector<8x128xf32>
    %180 = arith.mulf %178, %179 : vector<8x128xf32>
    %181 = vector.broadcast %158 : vector<1x128xf32> to vector<8x128xf32>
    %182 = arith.addf %180, %181 : vector<8x128xf32>
    %183 = arith.addf %110, %182 : vector<8x128xf32>
    %184 = math.tanh %183 : vector<8x128xf32>
    %c1_90 = arith.constant 1 : index
    %c0_91 = arith.constant 0 : index
    %c0_92 = arith.constant 0 : index
    %185 = vector.load %arg8[%c1_90, %c0_91, %c0_92] : memref<2x1x128xf32, #tpu.memory_space<vmem>>, vector<1x1x128xf32>
    %186 = vector.shape_cast %185 : vector<1x1x128xf32> to vector<1x128xf32>
    %c1_93 = arith.constant 1 : index
    %c0_94 = arith.constant 0 : index
    %c0_95 = arith.constant 0 : index
    %187 = vector.load %arg9[%c1_93, %c0_94, %c0_95] : memref<2x1x128xf32, #tpu.memory_space<vmem>>, vector<1x1x128xf32>
    %188 = vector.shape_cast %187 : vector<1x1x128xf32> to vector<1x128xf32>
    %cst_96 = arith.constant dense<0.000000e+00> : vector<8xf32>
    %189 = vector.multi_reduction <add>, %184, %cst_96 [1] : vector<8x128xf32> to vector<8xf32>
    %190 = vector.shape_cast %189 : vector<8xf32> to vector<8x1xf32>
    %cst_97 = arith.constant 3.125000e-02 : f32
    %191 = vector.broadcast %cst_97 : f32 to vector<8x1xf32>
    %192 = arith.mulf %190, %191 : vector<8x1xf32>
    %193 = vector.broadcast %192 : vector<8x1xf32> to vector<8x128xf32>
    %194 = arith.subf %184, %193 : vector<8x128xf32>
    %cst_98 = arith.constant 0.000000e+00 : f32
    %195 = vector.shape_cast %2 : vector<1x128xi1> to vector<1x128xi1>
    %196 = vector.broadcast %195 : vector<1x128xi1> to vector<8x128xi1>
    %197 = vector.broadcast %cst_98 : f32 to vector<8x128xf32>
    %198 = arith.select %196, %194, %197 : vector<8x128xi1>, vector<8x128xf32>
    %199 = arith.mulf %198, %198 : vector<8x128xf32>
    %cst_99 = arith.constant dense<0.000000e+00> : vector<8xf32>
    %200 = vector.multi_reduction <add>, %199, %cst_99 [1] : vector<8x128xf32> to vector<8xf32>
    %201 = vector.shape_cast %200 : vector<8xf32> to vector<8x1xf32>
    %cst_100 = arith.constant 3.125000e-02 : f32
    %202 = vector.broadcast %cst_100 : f32 to vector<8x1xf32>
    %203 = arith.mulf %201, %202 : vector<8x1xf32>
    %cst_101 = arith.constant 9.99999974E-6 : f32
    %204 = vector.broadcast %cst_101 : f32 to vector<8x1xf32>
    %205 = arith.addf %203, %204 : vector<8x1xf32>
    %206 = math.rsqrt %205 : vector<8x1xf32>
    %207 = vector.broadcast %206 : vector<8x1xf32> to vector<8x128xf32>
    %208 = arith.mulf %194, %207 : vector<8x128xf32>
    %209 = vector.broadcast %186 : vector<1x128xf32> to vector<8x128xf32>
    %210 = arith.mulf %208, %209 : vector<8x128xf32>
    %211 = vector.broadcast %188 : vector<1x128xf32> to vector<8x128xf32>
    %212 = arith.addf %210, %211 : vector<8x128xf32>
    %c0_102 = arith.constant 0 : index
    %c0_103 = arith.constant 0 : index
    %213 = vector.load %arg10[%c0_102, %c0_103] : memref<128x128xf32, #tpu.memory_space<vmem>>, vector<128x128xf32>
    %cst_104 = arith.constant dense<0.000000e+00> : vector<8x128xf32>
    %214 = tpu.matmul %212, %213, %cst_104 {dimension_numbers = #tpu.dot_dimension_numbers<[1], [0], [0], [1], [0, 0, 1, 1], [], []>} : vector<8x128xf32>, vector<128x128xf32>, vector<8x128xf32> -> vector<8x128xf32>
    %c0_105 = arith.constant 0 : index
    %c0_106 = arith.constant 0 : index
    %215 = vector.load %arg11[%c0_105, %c0_106] : memref<1x128xf32, #tpu.memory_space<vmem>>, vector<1x128xf32>
    %216 = vector.broadcast %215 : vector<1x128xf32> to vector<8x128xf32>
    %217 = arith.addf %214, %216 : vector<8x128xf32>
    %c0_107 = arith.constant 0 : index
    %c0_108 = arith.constant 0 : index
    %218 = vector.load %arg12[%c0_107, %c0_108] : memref<8x128xf32, #tpu.memory_space<vmem>>, vector<8x128xf32>
    tpu.vector_store %arg12[%c0_107, %c0_108], %217 {strides = array<i32>} : memref<8x128xf32, #tpu.memory_space<vmem>>, vector<8x128xf32>,
    return
  }
  func.func @transform_0(%arg0: i32) -> (i32, i32) {
    %c0_i32 = arith.constant 0 : i32
    %c0_i32_0 = arith.constant 0 : i32
    return %arg0, %c0_i32 : i32, i32
  }
  func.func @transform_1(%arg0: i32) -> (i32, i32) {
    %c0_i32 = arith.constant 0 : i32
    %c0_i32_0 = arith.constant 0 : i32
    %c0_i32_1 = arith.constant 0 : i32
    return %c0_i32, %c0_i32_0 : i32, i32
  }
  func.func @transform_2(%arg0: i32) -> (i32, i32) {
    %c0_i32 = arith.constant 0 : i32
    %c0_i32_0 = arith.constant 0 : i32
    %c0_i32_1 = arith.constant 0 : i32
    return %c0_i32, %c0_i32_0 : i32, i32
  }
  func.func @transform_3(%arg0: i32) -> (i32, i32, i32) {
    %c0_i32 = arith.constant 0 : i32
    %c0_i32_0 = arith.constant 0 : i32
    %c0_i32_1 = arith.constant 0 : i32
    %c0_i32_2 = arith.constant 0 : i32
    return %c0_i32, %c0_i32_0, %c0_i32_1 : i32, i32, i32
  }
  func.func @transform_4(%arg0: i32) -> (i32, i32, i32) {
    %c0_i32 = arith.constant 0 : i32
    %c0_i32_0 = arith.constant 0 : i32
    %c0_i32_1 = arith.constant 0 : i32
    %c0_i32_2 = arith.constant 0 : i32
    return %c0_i32, %c0_i32_0, %c0_i32_1 : i32, i32, i32
  }
  func.func @transform_5(%arg0: i32) -> (i32, i32, i32) {
    %c0_i32 = arith.constant 0 : i32
    %c0_i32_0 = arith.constant 0 : i32
    %c0_i32_1 = arith.constant 0 : i32
    %c0_i32_2 = arith.constant 0 : i32
    return %c0_i32, %c0_i32_0, %c0_i32_1 : i32, i32, i32
  }
  func.func @transform_6(%arg0: i32) -> (i32, i32, i32) {
    %c0_i32 = arith.constant 0 : i32
    %c0_i32_0 = arith.constant 0 : i32
    %c0_i32_1 = arith.constant 0 : i32
    %c0_i32_2 = arith.constant 0 : i32
    return %c0_i32, %c0_i32_0, %c0_i32_1 : i32, i32, i32
  }
  func.func @transform_7(%arg0: i32) -> (i32, i32, i32) {
    %c0_i32 = arith.constant 0 : i32
    %c0_i32_0 = arith.constant 0 : i32
    %c0_i32_1 = arith.constant 0 : i32
    %c0_i32_2 = arith.constant 0 : i32
    return %c0_i32, %c0_i32_0, %c0_i32_1 : i32, i32, i32
  }
  func.func @transform_8(%arg0: i32) -> (i32, i32, i32) {
    %c0_i32 = arith.constant 0 : i32
    %c0_i32_0 = arith.constant 0 : i32
    %c0_i32_1 = arith.constant 0 : i32
    %c0_i32_2 = arith.constant 0 : i32
    return %c0_i32, %c0_i32_0, %c0_i32_1 : i32, i32, i32
  }
  func.func @transform_9(%arg0: i32) -> (i32, i32) {
    %c0_i32 = arith.constant 0 : i32
    %c0_i32_0 = arith.constant 0 : i32
    %c0_i32_1 = arith.constant 0 : i32
    return %c0_i32, %c0_i32_0 : i32, i32
  }
  func.func @transform_10(%arg0: i32) -> (i32, i32) {
    %c0_i32 = arith.constant 0 : i32
    %c0_i32_0 = arith.constant 0 : i32
    %c0_i32_1 = arith.constant 0 : i32
    return %c0_i32, %c0_i32_0 : i32, i32
  }
  func.func @transform_11(%arg0: i32) -> (i32, i32) {
    %c0_i32 = arith.constant 0 : i32
    %c0_i32_0 = arith.constant 0 : i32
    return %arg0, %c0_i32 : i32, i32
  }
}

</mosaic_0001>

<llo_original>
// kernel: tpu_custom_call.1
$region0: #{tpu_custom_call.1}
  #allocation0 [shape = 'u32[]', space=smem, size = 0x4, offset = 0x4, fixed_abs, tag = 'smem constant byte address 0x4 - core index']
  #allocation1 [shape = 'u32[72,128]{1,0:T(1,128)}', space=vmem, size = 0x9000, scoped, tag = 'internal scratch']
  %s0 = inlined_call_operand.hbm [shape: f32[8,128], index: 0, kind: input, shape index: {}]
  %s1 = inlined_call_operand.hbm [shape: f32[8,128], index: 1, kind: output, shape index: {}]
  %s2 = sld [smem:[#allocation0]]
  $region18: #{tpu_custom_call.1} parent=0
    _
  %s4 = ssub.s32 1, %s2
  %s5 = scalar_select 0, %s4, %s2
  $region1: #{tpu_custom_call.1} parent=0
    #allocation2 [shape = 'u8[4096]{0}', space=vmem, size = 0x1000, scoped, tag = 'input window, operand 0, single buffered']
    #allocation3 [shape = 's32[1]{0}', space=sflag, size = 0x4, scoped, tag = 'scoped memory for tpu_custom_call.1']
    #allocation4 [shape = 's32[1]{0}', space=sflag, size = 0x4, scoped, tag = 'scoped memory for tpu_custom_call.1']
    #allocation5 [shape = 'u8[4096]{0}', space=vmem, size = 0x1000, scoped, tag = 'output window, operand 0, single buffered']
    %6 = vsyncpa [#allocation3], 0
    %7 = vsyncpa [#allocation4], 0
    // Predicated region
    $region2: #{tpu_custom_call.1} parent=1 // pred_check
      _
    $region3: #{tpu_custom_call.1} parent=1 // pred_check_branch
      %9 = sbr.rel (0) target = $region5
    $region4: #{tpu_custom_call.1} parent=1 // pred_region
      %11 = vsyncadd [#allocation3], 0
      %s13 = sshll.u32 %s0, 4
      %s14 = int_to_ptr.hbm [resolvable:$true] %s13
      %s15 = sshll.u32 [#allocation2], 4
      %s16 = int_to_ptr.vmem [resolvable:$true] %s15
      %18 = dma.hbm_to_vmem [thread:$0]  %s14, 128, %s16, [#allocation3]
    $region5: #{tpu_custom_call.1} parent=1 // pred_fallthru
      _
    // Predicated region
    $region6: #{tpu_custom_call.1} parent=1 // pred_check
      _
    $region7: #{tpu_custom_call.1} parent=1 // pred_check_branch
      %20 = sbr.rel (0) target = $region9
    $region8: #{tpu_custom_call.1} parent=1 // pred_region
      %22 = dma.done [#allocation3], 128
    $region9: #{tpu_custom_call.1} parent=1 // pred_fallthru
      _
    %v23 = vld [vmem:[#allocation2] sm:$0xff]
    %24 = vst [vmem:[#allocation5] sm:$0xff] %v23
    // Predicated region
    $region10: #{tpu_custom_call.1} parent=1 // pred_check
      _
    $region11: #{tpu_custom_call.1} parent=1 // pred_check_branch
      %26 = sbr.rel (0) target = $region13
    $region12: #{tpu_custom_call.1} parent=1 // pred_region
      %28 = vsyncadd [#allocation4], 0
      %s30 = sshll.u32 [#allocation5], 4
      %s31 = int_to_ptr.vmem [resolvable:$true] %s30
      %s32 = sshll.u32 %s1, 4
      %s33 = int_to_ptr.hbm [resolvable:$true] %s32
      %35 = dma.vmem_to_hbm [thread:$0]  %s31, 128, %s33, [#allocation4]
    $region13: #{tpu_custom_call.1} parent=1 // pred_fallthru
      _
    // Predicated region
    $region14: #{tpu_custom_call.1} parent=1 // pred_check
      _
    $region15: #{tpu_custom_call.1} parent=1 // pred_check_branch
      %37 = sbr.rel (0) target = $region17
    $region16: #{tpu_custom_call.1} parent=1 // pred_region
      %39 = dma.done [#allocation4], 128
    $region17: #{tpu_custom_call.1} parent=1 // pred_fallthru
      _
    %40 = vsyncpa [#allocation3], 1
    %41 = vsyncpa [#allocation4], 1

// kernel: _forward_jit.1
$region0: #{_forward_jit.1}
  #allocation0 [shape = 'u32[]', space=smem, size = 0x4, offset = 0x4, fixed_abs, tag = 'smem constant byte address 0x4 - core index']
  #allocation1 [shape = 'u32[72,128]{1,0:T(1,128)}', space=vmem, size = 0x9000, scoped, tag = 'internal scratch']
  %s0 = inlined_call_operand.vmem [shape: f32[16,48], index: 0, kind: input, shape index: {}]
  %s1 = inlined_call_operand.vmem [shape: f32[48,128], index: 1, kind: input, shape index: {}]
  %s2 = inlined_call_operand.vmem [shape: f32[1,128], index: 2, kind: input, shape index: {}]
  %s3 = inlined_call_operand.vmem [shape: f32[4,128,128], index: 3, kind: input, shape index: {}]
  %s4 = inlined_call_operand.vmem [shape: f32[4,1,128], index: 4, kind: input, shape index: {}]
  %s5 = inlined_call_operand.vmem [shape: f32[4,1,128], index: 5, kind: input, shape index: {}]
  %s6 = inlined_call_operand.vmem [shape: f32[4,1,128], index: 6, kind: input, shape index: {}]
  %s7 = inlined_call_operand.vmem [shape: f32[2,1,128], index: 7, kind: input, shape index: {}]
  %s8 = inlined_call_operand.vmem [shape: f32[2,1,128], index: 8, kind: input, shape index: {}]
  %s9 = inlined_call_operand.vmem [shape: f32[128,128], index: 9, kind: input, shape index: {}]
  %s10 = inlined_call_operand.vmem [shape: f32[1,128], index: 10, kind: input, shape index: {}]
  %s11 = inlined_call_operand.hbm [shape: f32[16,128], index: 11, kind: output, shape index: {}]
  %s12 = sld [smem:[#allocation0]]
  $region77: #{_forward_jit.1} parent=0
    _
  %s14 = ssub.s32 1, %s12
  %s15 = scalar_select 0, %s14, %s12
  $region1: #{_forward_jit.1} parent=0
    #allocation2 [shape = 'u8[8192]{0}', space=vmem, size = 0x2000, scoped, tag = 'output window, operand 0']
    #allocation3 [shape = 's32[2]{0}', space=sflag, size = 0x8, scoped, tag = 'scoped memory for _forward_jit.1']
    %16 = vsyncpa [#allocation3], 0
    %s17 = scalar_lea.sflag [#allocation3], 1
    %18 = vsyncpa %s17, 0
    loop: start=0, step=1, limit=4
    $region2: #{_forward_jit.1} parent=1 // loop_pre_header
      _
    $region3: #{_forward_jit.1} parent=1 // loop_header
      %s20 = sphi 0, %s24
      %p21 = scmp.ge.s32.totalorder %s20, 4
      %s30 = sphi 0, %s32
      %s33 = sphi 0, %s30
      %s34 = sphi 0, %s33
      %s50 = sphi 0, %s34
      %s54 = sphi 0, %s54
      %s56 = sphi 0, %s54
      %s57 = sphi 0, %s56
      %s71 = sphi 0, %s57
      %s75 = sphi 0, %s75
      %s77 = sphi 0, %s75
      %s78 = sphi 0, %s77
      %s92 = sphi 0, %s78
      %s96 = sphi 0, %s96
      %s98 = sphi 0, %s96
      %s99 = sphi 0, %s98
      %s113 = sphi 0, %s99
      %s117 = sphi 0, %s117
      %s119 = sphi 0, %s117
      %s120 = sphi 0, %s119
      %s134 = sphi 0, %s120
      %s138 = sphi 0, %s138
      %s140 = sphi 0, %s138
      %s141 = sphi 0, %s140
      %s155 = sphi 0, %s141
      %s159 = sphi 0, %s159
      %s161 = sphi 0, %s159
      %s162 = sphi 0, %s161
      %s176 = sphi 0, %s162
      %s180 = sphi 0, %s180
      %s182 = sphi 0, %s180
      %s183 = sphi 0, %s182
      %s197 = sphi 0, %s183
      %s201 = sphi 0, %s201
      %s203 = sphi 0, %s201
      %s204 = sphi 0, %s203
      %s218 = sphi 0, %s204
      %s222 = sphi 0, %s222
      %s224 = sphi 0, %s222
      %s225 = sphi 0, %s224
      %s239 = sphi 0, %s225
      %s243 = sphi 0, %s243
      %s245 = sphi 0, %s243
      %s246 = sphi 0, %s245
      %s260 = sphi 0, %s246
      %s266 = sphi 0, %s268
      %s269 = sphi 0, %s266
      %s270 = sphi 0, %s269
      %s286 = sphi 0, %s270
    $region4: #{_forward_jit.1} parent=1 // loop_header_branch
      %23 = sbr.rel (%p21) target = $region8
    $region5: #{_forward_jit.1} parent=1 // loop_body
      %s25 = ssub.s32 %s20, 1
      %s26 = ssub.s32 %s20, 2
      %s27 = sadd.s32 %s20, 1
      %s28 = ssub.s32 %s20, %s27
      %p29 = scmp.eq.s32.totalorder %s28, 0
      %s31 = sadd.s32 %s30, 1
      %s32 = scalar_select %p29, %s30, %s31
      %p35 = pneg %p29
      %p36 = scmp.eq.s32.totalorder %s20, 1
      %p37 = por %p35, %p36
      %p38 = scmp.ne.s32.totalorder %s30, %s33
      %p39 = scmp.eq.s32.totalorder %s20, 0
      %p40 = por %p38, %p39
      %p41 = scmp.ne.s32.totalorder %s30, %s33
      %p42 = scmp.eq.s32.totalorder %s25, 1
      %p43 = por %p41, %p42
      %p44 = scmp.ne.s32.totalorder %s33, %s34
      %p45 = scmp.eq.s32.totalorder %s25, 0
      %p46 = por %p44, %p45
      %p47 = scmp.ne.s32.totalorder %s33, %s34
      %p48 = scmp.eq.s32.totalorder %s26, 1
      %p49 = por %p47, %p48
      %p51 = scmp.ne.s32.totalorder %s34, %s50
      %p52 = scmp.eq.s32.totalorder %s26, 0
      %p53 = por %p51, %p52
      %s55 = sadd.s32 %s54, 1
      %p58 = scmp.eq.s32.totalorder %s20, 1
      %p59 = scmp.ne.s32.totalorder %s54, %s56
      %p60 = scmp.eq.s32.totalorder %s20, 0
      %p61 = por %p59, %p60
      %p62 = scmp.ne.s32.totalorder %s54, %s56
      %p63 = scmp.eq.s32.totalorder %s25, 1
      %p64 = por %p62, %p63
      %p65 = scmp.ne.s32.totalorder %s56, %s57
      %p66 = scmp.eq.s32.totalorder %s25, 0
      %p67 = por %p65, %p66
      %p68 = scmp.ne.s32.totalorder %s56, %s57
      %p69 = scmp.eq.s32.totalorder %s26, 1
      %p70 = por %p68, %p69
      %p72 = scmp.ne.s32.totalorder %s57, %s71
      %p73 = scmp.eq.s32.totalorder %s26, 0
      %p74 = por %p72, %p73
      %s76 = sadd.s32 %s75, 1
      %p79 = scmp.eq.s32.totalorder %s20, 1
      %p80 = scmp.ne.s32.totalorder %s75, %s77
      %p81 = scmp.eq.s32.totalorder %s20, 0
      %p82 = por %p80, %p81
      %p83 = scmp.ne.s32.totalorder %s75, %s77
      %p84 = scmp.eq.s32.totalorder %s25, 1
      %p85 = por %p83, %p84
      %p86 = scmp.ne.s32.totalorder %s77, %s78
      %p87 = scmp.eq.s32.totalorder %s25, 0
      %p88 = por %p86, %p87
      %p89 = scmp.ne.s32.totalorder %s77, %s78
      %p90 = scmp.eq.s32.totalorder %s26, 1
      %p91 = por %p89, %p90
      %p93 = scmp.ne.s32.totalorder %s78, %s92
      %p94 = scmp.eq.s32.totalorder %s26, 0
      %p95 = por %p93, %p94
      %s97 = sadd.s32 %s96, 1
      %p100 = scmp.eq.s32.totalorder %s20, 1
      %p101 = scmp.ne.s32.totalorder %s96, %s98
      %p102 = scmp.eq.s32.totalorder %s20, 0
      %p103 = por %p101, %p102
      %p104 = scmp.ne.s32.totalorder %s96, %s98
      %p105 = scmp.eq.s32.totalorder %s25, 1
      %p106 = por %p104, %p105
      %p107 = scmp.ne.s32.totalorder %s98, %s99
      %p108 = scmp.eq.s32.totalorder %s25, 0
      %p109 = por %p107, %p108
      %p110 = scmp.ne.s32.totalorder %s98, %s99
      %p111 = scmp.eq.s32.totalorder %s26, 1
      %p112 = por %p110, %p111
      %p114 = scmp.ne.s32.totalorder %s99, %s113
      %p115 = scmp.eq.s32.totalorder %s26, 0
      %p116 = por %p114, %p115
      %s118 = sadd.s32 %s117, 1
      %p121 = scmp.eq.s32.totalorder %s20, 1
      %p122 = scmp.ne.s32.totalorder %s117, %s119
      %p123 = scmp.eq.s32.totalorder %s20, 0
      %p124 = por %p122, %p123
      %p125 = scmp.ne.s32.totalorder %s117, %s119
      %p126 = scmp.eq.s32.totalorder %s25, 1
      %p127 = por %p125, %p126
      %p128 = scmp.ne.s32.totalorder %s119, %s120
      %p129 = scmp.eq.s32.totalorder %s25, 0
      %p130 = por %p128, %p129
      %p131 = scmp.ne.s32.totalorder %s119, %s120
      %p132 = scmp.eq.s32.totalorder %s26, 1
      %p133 = por %p131, %p132
      %p135 = scmp.ne.s32.totalorder %s120, %s134
      %p136 = scmp.eq.s32.totalorder %s26, 0
      %p137 = por %p135, %p136
      %s139 = sadd.s32 %s138, 1
      %p142 = scmp.eq.s32.totalorder %s20, 1
      %p143 = scmp.ne.s32.totalorder %s138, %s140
      %p144 = scmp.eq.s32.totalorder %s20, 0
      %p145 = por %p143, %p144
      %p146 = scmp.ne.s32.totalorder %s138, %s140
      %p147 = scmp.eq.s32.totalorder %s25, 1
      %p148 = por %p146, %p147
      %p149 = scmp.ne.s32.totalorder %s140, %s141
      %p150 = scmp.eq.s32.totalorder %s25, 0
      %p151 = por %p149, %p150
      %p152 = scmp.ne.s32.totalorder %s140, %s141
      %p153 = scmp.eq.s32.totalorder %s26, 1
      %p154 = por %p152, %p153
      %p156 = scmp.ne.s32.totalorder %s141, %s155
      %p157 = scmp.eq.s32.totalorder %s26, 0
      %p158 = por %p156, %p157
      %s160 = sadd.s32 %s159, 1
      %p163 = scmp.eq.s32.totalorder %s20, 1
      %p164 = scmp.ne.s32.totalorder %s159, %s161
      %p165 = scmp.eq.s32.totalorder %s20, 0
      %p166 = por %p164, %p165
      %p167 = scmp.ne.s32.totalorder %s159, %s161
      %p168 = scmp.eq.s32.totalorder %s25, 1
      %p169 = por %p167, %p168
      %p170 = scmp.ne.s32.totalorder %s161, %s162
      %p171 = scmp.eq.s32.totalorder %s25, 0
      %p172 = por %p170, %p171
      %p173 = scmp.ne.s32.totalorder %s161, %s162
      %p174 = scmp.eq.s32.totalorder %s26, 1
      %p175 = por %p173, %p174
      %p177 = scmp.ne.s32.totalorder %s162, %s176
      %p178 = scmp.eq.s32.totalorder %s26, 0
      %p179 = por %p177, %p178
      %s181 = sadd.s32 %s180, 1
      %p184 = scmp.eq.s32.totalorder %s20, 1
      %p185 = scmp.ne.s32.totalorder %s180, %s182
      %p186 = scmp.eq.s32.totalorder %s20, 0
      %p187 = por %p185, %p186
      %p188 = scmp.ne.s32.totalorder %s180, %s182
      %p189 = scmp.eq.s32.totalorder %s25, 1
      %p190 = por %p188, %p189
      %p191 = scmp.ne.s32.totalorder %s182, %s183
      %p192 = scmp.eq.s32.totalorder %s25, 0
      %p193 = por %p191, %p192
      %p194 = scmp.ne.s32.totalorder %s182, %s183
      %p195 = scmp.eq.s32.totalorder %s26, 1
      %p196 = por %p194, %p195
      %p198 = scmp.ne.s32.totalorder %s183, %s197
      %p199 = scmp.eq.s32.totalorder %s26, 0
      %p200 = por %p198, %p199
      %s202 = sadd.s32 %s201, 1
      %p205 = scmp.eq.s32.totalorder %s20, 1
      %p206 = scmp.ne.s32.totalorder %s201, %s203
      %p207 = scmp.eq.s32.totalorder %s20, 0
      %p208 = por %p206, %p207
      %p209 = scmp.ne.s32.totalorder %s201, %s203
      %p210 = scmp.eq.s32.totalorder %s25, 1
      %p211 = por %p209, %p210
      %p212 = scmp.ne.s32.totalorder %s203, %s204
      %p213 = scmp.eq.s32.totalorder %s25, 0
      %p214 = por %p212, %p213
      %p215 = scmp.ne.s32.totalorder %s203, %s204
      %p216 = scmp.eq.s32.totalorder %s26, 1
      %p217 = por %p215, %p216
      %p219 = scmp.ne.s32.totalorder %s204, %s218
      %p220 = scmp.eq.s32.totalorder %s26, 0
      %p221 = por %p219, %p220
      %s223 = sadd.s32 %s222, 1
      %p226 = scmp.eq.s32.totalorder %s20, 1
      %p227 = scmp.ne.s32.totalorder %s222, %s224
      %p228 = scmp.eq.s32.totalorder %s20, 0
      %p229 = por %p227, %p228
      %p230 = scmp.ne.s32.totalorder %s222, %s224
      %p231 = scmp.eq.s32.totalorder %s25, 1
      %p232 = por %p230, %p231
      %p233 = scmp.ne.s32.totalorder %s224, %s225
      %p234 = scmp.eq.s32.totalorder %s25, 0
      %p235 = por %p233, %p234
      %p236 = scmp.ne.s32.totalorder %s224, %s225
      %p237 = scmp.eq.s32.totalorder %s26, 1
      %p238 = por %p236, %p237
      %p240 = scmp.ne.s32.totalorder %s225, %s239
      %p241 = scmp.eq.s32.totalorder %s26, 0
      %p242 = por %p240, %p241
      %s244 = sadd.s32 %s243, 1
      %p247 = scmp.eq.s32.totalorder %s20, 1
      %p248 = scmp.ne.s32.totalorder %s243, %s245
      %p249 = scmp.eq.s32.totalorder %s20, 0
      %p250 = por %p248, %p249
      %p251 = scmp.ne.s32.totalorder %s243, %s245
      %p252 = scmp.eq.s32.totalorder %s25, 1
      %p253 = por %p251, %p252
      %p254 = scmp.ne.s32.totalorder %s245, %s246
      %p255 = scmp.eq.s32.totalorder %s25, 0
      %p256 = por %p254, %p255
      %p257 = scmp.ne.s32.totalorder %s245, %s246
      %p258 = scmp.eq.s32.totalorder %s26, 1
      %p259 = por %p257, %p258
      %p261 = scmp.ne.s32.totalorder %s246, %s260
      %p262 = scmp.eq.s32.totalorder %s26, 0
      %p263 = por %p261, %p262
      %s264 = ssub.s32 %s20, %s27
      %p265 = scmp.eq.s32.totalorder %s264, 0
      %s267 = sadd.s32 %s266, 1
      %s268 = scalar_select %p265, %s266, %s267
      %p271 = pneg %p265
      %p272 = scmp.eq.s32.totalorder %s20, 1
      %p273 = por %p271, %p272
      %p274 = scmp.ne.s32.totalorder %s266, %s269
      %p275 = scmp.eq.s32.totalorder %s20, 0
      %p276 = por %p274, %p275
      %p277 = scmp.ne.s32.totalorder %s266, %s269
      %p278 = scmp.eq.s32.totalorder %s25, 1
      %p279 = por %p277, %p278
      %p280 = scmp.ne.s32.totalorder %s269, %s270
      %p281 = scmp.eq.s32.totalorder %s25, 0
      %p282 = por %p280, %p281
      %p283 = scmp.ne.s32.totalorder %s269, %s270
      %p284 = scmp.eq.s32.totalorder %s26, 1
      %p285 = por %p283, %p284
      %p287 = scmp.ne.s32.totalorder %s270, %s286
      %p288 = scmp.eq.s32.totalorder %s26, 0
      %p289 = por %p287, %p288
      %p290 = scmp.le.s32.totalorder 1, %s20
      %p291 = scmp.lt.s32.totalorder %s20, 3
      %p292 = pnand %p290, %p291
      %p293 = pneg %p292
      // Predicated region
      $region9: #{_forward_jit.1} parent=5 // pred_check
        _
      $region10: #{_forward_jit.1} parent=5 // pred_check_branch
        %295 = sbr.rel (%p292) target = $region12
      $region11: #{_forward_jit.1} parent=5 // pred_region
        %s296 = ssub.s32 %s20, 1
        // Predicated region
        $region13: #{_forward_jit.1} parent=11 // pred_check
          %p297 = pneg %p67
        $region14: #{_forward_jit.1} parent=11 // pred_check_branch
          %299 = sbr.rel (%p297) target = $region16
        $region15: #{_forward_jit.1} parent=11 // pred_region
          _
        $region16: #{_forward_jit.1} parent=11 // pred_fallthru
          _
        // Predicated region
        $region17: #{_forward_jit.1} parent=11 // pred_check
          %p300 = pneg %p88
        $region18: #{_forward_jit.1} parent=11 // pred_check_branch
          %302 = sbr.rel (%p300) target = $region20
        $region19: #{_forward_jit.1} parent=11 // pred_region
          _
        $region20: #{_forward_jit.1} parent=11 // pred_fallthru
          _
        // Predicated region
        $region21: #{_forward_jit.1} parent=11 // pred_check
          %p303 = pneg %p109
        $region22: #{_forward_jit.1} parent=11 // pred_check_branch
          %305 = sbr.rel (%p303) target = $region24
        $region23: #{_forward_jit.1} parent=11 // pred_region
          _
        $region24: #{_forward_jit.1} parent=11 // pred_fallthru
          _
        // Predicated region
        $region25: #{_forward_jit.1} parent=11 // pred_check
          %p306 = pneg %p130
        $region26: #{_forward_jit.1} parent=11 // pred_check_branch
          %308 = sbr.rel (%p306) target = $region28
        $region27: #{_forward_jit.1} parent=11 // pred_region
          _
        $region28: #{_forward_jit.1} parent=11 // pred_fallthru
          _
        // Predicated region
        $region29: #{_forward_jit.1} parent=11 // pred_check
          %p309 = pneg %p151
        $region30: #{_forward_jit.1} parent=11 // pred_check_branch
          %311 = sbr.rel (%p309) target = $region32
        $region31: #{_forward_jit.1} parent=11 // pred_region
          _
        $region32: #{_forward_jit.1} parent=11 // pred_fallthru
          _
        // Predicated region
        $region33: #{_forward_jit.1} parent=11 // pred_check
          %p312 = pneg %p172
        $region34: #{_forward_jit.1} parent=11 // pred_check_branch
          %314 = sbr.rel (%p312) target = $region36
        $region35: #{_forward_jit.1} parent=11 // pred_region
          _
        $region36: #{_forward_jit.1} parent=11 // pred_fallthru
          _
        // Predicated region
        $region37: #{_forward_jit.1} parent=11 // pred_check
          %p315 = pneg %p193
        $region38: #{_forward_jit.1} parent=11 // pred_check_branch
          %317 = sbr.rel (%p315) target = $region40
        $region39: #{_forward_jit.1} parent=11 // pred_region
          _
        $region40: #{_forward_jit.1} parent=11 // pred_fallthru
          _
        // Predicated region
        $region41: #{_forward_jit.1} parent=11 // pred_check
          %p318 = pneg %p214
        $region42: #{_forward_jit.1} parent=11 // pred_check_branch
          %320 = sbr.rel (%p318) target = $region44
        $region43: #{_forward_jit.1} parent=11 // pred_region
          _
        $region44: #{_forward_jit.1} parent=11 // pred_fallthru
          _
        // Predicated region
        $region45: #{_forward_jit.1} parent=11 // pred_check
          %p321 = pneg %p235
        $region46: #{_forward_jit.1} parent=11 // pred_check_branch
          %323 = sbr.rel (%p321) target = $region48
        $region47: #{_forward_jit.1} parent=11 // pred_region
          _
        $region48: #{_forward_jit.1} parent=11 // pred_fallthru
          _
        // Predicated region
        $region49: #{_forward_jit.1} parent=11 // pred_check
          %p324 = pneg %p256
        $region50: #{_forward_jit.1} parent=11 // pred_check_branch
          %326 = sbr.rel (%p324) target = $region52
        $region51: #{_forward_jit.1} parent=11 // pred_region
          _
        $region52: #{_forward_jit.1} parent=11 // pred_fallthru
          _
      $region12: #{_forward_jit.1} parent=5 // pred_fallthru
        _
      %p327 = scmp.lt.s32.totalorder %s20, 2
      // Predicated region
      $region53: #{_forward_jit.1} parent=5 // pred_check
        %p328 = pneg %p327
      $region54: #{_forward_jit.1} parent=5 // pred_check_branch
        %330 = sbr.rel (%p328) target = $region56
      $region55: #{_forward_jit.1} parent=5 // pred_region
        // Predicated region
        $region57: #{_forward_jit.1} parent=55 // pred_check
          %p331 = pneg %p40
        $region58: #{_forward_jit.1} parent=55 // pred_check_branch
          %333 = sbr.rel (%p331) target = $region60
        $region59: #{_forward_jit.1} parent=55 // pred_region
          %p334 = scmp.lt.s32.totalorder %s20, 1
          %s335 = scalar_select %p334, %s20, 1
          %s336 = smul.addr %s335, 8
          %s337 = scalar_lea.vmem %s0, %s336
        $region60: #{_forward_jit.1} parent=55 // pred_fallthru
          _
      $region56: #{_forward_jit.1} parent=5 // pred_fallthru
        _
      %p338 = scmp.le.s32.totalorder 1, %s20
      %p339 = scmp.lt.s32.totalorder %s20, 3
      %p340 = pnand %p338, %p339
      %p341 = pneg %p340
      // Predicated region
      $region61: #{_forward_jit.1} parent=5 // pred_check
        _
      $region62: #{_forward_jit.1} parent=5 // pred_check_branch
        %343 = sbr.rel (%p340) target = $region64
      $region63: #{_forward_jit.1} parent=5 // pred_region
        %s344 = ssub.s32 %s20, 1
        %p345 = scmp.lt.s32.totalorder %s25, 1
        %s346 = scalar_select %p345, %s25, 1
        %s347 = smul.addr %s346, 8
        %s348 = scalar_lea.vmem %s0, %s347
        %p349 = pneg %p46
        %p350 = pneg %p43
        %p351 = pneg %p67
        %p352 = pneg %p64
        %p353 = pneg %p88
        %p354 = pneg %p85
        %p355 = pneg %p109
        %p356 = pneg %p106
        %p357 = pneg %p130
        %p358 = pneg %p127
        %p359 = pneg %p151
        %p360 = pneg %p148
        %p361 = pneg %p172
        %p362 = pneg %p169
        %p363 = pneg %p193
        %p364 = pneg %p190
        %p365 = pneg %p214
        %p366 = pneg %p211
        %p367 = pneg %p235
        %p368 = pneg %p232
        %p369 = pneg %p256
        %p370 = pneg %p253
        %p371 = pneg %p282
        %p372 = pneg %p279
        %s373 = sand.u32 %s269, 1
        %s374 = scalar_lea.sflag [#allocation3], %s373
        %s375 = sand.u32 %s269, 1
        %s376 = smul.addr %s375, 8
        %s377 = scalar_lea.vmem [#allocation2], %s376
        %p378 = scmp.lt.s32.totalorder %s25, 1
        %s379 = scalar_select %p378, %s25, 1
        %s380 = smul.addr %s379, 8
        %s381 = scalar_lea.vmem %s0, %s380
        %v382 = vlaneseq
        %v383 = vand.u32 %v382, 127
        %vm384 = vcmp.lt.s32.totalorder %v383, 32
        %v385 = vld [vmem:[%s381] sm:$0xff]
        %v386 = vld [vmem:[%s1] sm:$0xff]
        %v387 = vld [vmem:[%s1 + $0x8] sm:$0xff]
        %v388 = vld [vmem:[%s1 + $0x10] sm:$0xff]
        %v389 = vld [vmem:[%s1 + $0x18] sm:$0xff]
        %v390 = vld [vmem:[%s1 + $0x20] sm:$0xff]
        %v391 = vld [vmem:[%s1 + $0x28] sm:$0xff]
        %v392 = vld [vmem:[%s2] sm:$0x1]
        %v394 = vperm.slane %v392, 0
        %vm396 = vcmask 392192
        %v398 = vsel %vm396, %v385, 0
        %400 = vmatpush.msra.mxu0 0.0
        %401 = vmatpush.msra.mxu0 0.0
        %402 = vmatpush.msra.mxu0 0.0
        %403 = vmatpush.msra.mxu0 0.0
        %404 = vmatpush.msra.mxu0 0.0
        %405 = vmatpush.msra.mxu0 0.0
        %406 = vmatpush.msra.mxu0 0.0
        %407 = vmatpush.msra.mxu0 0.0
        %408 = vmatpush.msra.mxu0 0.0
        %409 = vmatpush.msra.mxu0 0.0
        %410 = vmatpush.msra.mxu0 %v391
        %411 = vmatpush.msra.mxu0 %v390
        %412 = vmatpush.msra.mxu0 %v389
        %413 = vmatpush.msra.mxu0 %v388
        %414 = vmatpush.msra.mxu0 %v387
        %415 = vmatpush.msra.mxu0 %v386
        %416 = vmatmul.f32.gmra.mxu0 %v398
        %v417 = vpop.f32.mrf.mxu0
        %v418 = vadd.f32 %v394, %v417
        %419 = vdwg.mxu0
        %v420 = vld [vmem:[%s3] sm:$0xff]
        %v421 = vld [vmem:[%s3 + $0x8] sm:$0xff]
        %v422 = vld [vmem:[%s3 + $0x10] sm:$0xff]
        %v423 = vld [vmem:[%s3 + $0x18] sm:$0xff]
        %v424 = vld [vmem:[%s3 + $0x20] sm:$0xff]
        %v425 = vld [vmem:[%s3 + $0x28] sm:$0xff]
        %v426 = vld [vmem:[%s3 + $0x30] sm:$0xff]
        %v427 = vld [vmem:[%s3 + $0x38] sm:$0xff]
        %v428 = vld [vmem:[%s3 + $0x40] sm:$0xff]
        %v429 = vld [vmem:[%s3 + $0x48] sm:$0xff]
        %v430 = vld [vmem:[%s3 + $0x50] sm:$0xff]
        %v431 = vld [vmem:[%s3 + $0x58] sm:$0xff]
        %v432 = vld [vmem:[%s3 + $0x60] sm:$0xff]
        %v433 = vld [vmem:[%s3 + $0x68] sm:$0xff]
        %v434 = vld [vmem:[%s3 + $0x70] sm:$0xff]
        %v435 = vld [vmem:[%s3 + $0x78] sm:$0xff]
        %v436 = vld [vmem:[%s4] sm:$0x1]
        %v438 = vperm.slane %v436, 0
        %440 = vmatpush.msra.mxu0 %v435
        %441 = vmatpush.msra.mxu0 %v434
        %442 = vmatpush.msra.mxu0 %v433
        %443 = vmatpush.msra.mxu0 %v432
        %444 = vmatpush.msra.mxu0 %v431
        %445 = vmatpush.msra.mxu0 %v430
        %446 = vmatpush.msra.mxu0 %v429
        %447 = vmatpush.msra.mxu0 %v428
        %448 = vmatpush.msra.mxu0 %v427
        %449 = vmatpush.msra.mxu0 %v426
        %450 = vmatpush.msra.mxu0 %v425
        %451 = vmatpush.msra.mxu0 %v424
        %452 = vmatpush.msra.mxu0 %v423
        %453 = vmatpush.msra.mxu0 %v422
        %454 = vmatpush.msra.mxu0 %v421
        %455 = vmatpush.msra.mxu0 %v420
        %456 = vmatmul.f32.gmra.mxu0 %v418
        %v457 = vpop.f32.mrf.mxu0
        %v458 = vadd.f32 %v438, %v457
        %459 = vdwg.mxu0
        %v460 = vtanh.pop %v458
        %v461 = vld [vmem:[%s5] sm:$0x1]
        %v462 = vld [vmem:[%s6] sm:$0x1]
        %463 = vadd.xlane.f32.xlu0 %v460
        %v464 = vpop.xlane.xlu0 %463
        %v465 = vmul.f32 %v464, 0.03125
        %v466 = vsub.f32 %v460, %v465
        %v467 = vsel %vm384, 1, 0
        %vm468 = vcmp.eq.s32.totalorder %v467, 1
        %v469 = vsel %vm468, %v466, 0.0
        %v470 = vmul.f32 %v469, %v469
        %471 = vadd.xlane.f32.xlu0 %v470
        %v472 = vpop.xlane.xlu0 %471
        %v473 = vmul.f32 %v472, 0.03125
        %v474 = vadd.f32 %v473, 1e-05
        %v475 = vrsqrt.pop %v474
        %v476 = vmul.f32 %v475, %v474
        %v477 = vmul.f32 %v476, %v475
        %v478 = vmul.f32 0.5, %v477
        %v479 = vsub.f32 1.5, %v478
        %v480 = vmul.f32 %v475, %v479
        %vm481 = vweird.f32 %v474
        %vm482 = vweird.f32 %v475
        %vm483 = vmor %vm481, %vm482
        %v484 = vsel %vm483, %v475, %v480
        %v485 = vmul.f32 %v466, %v484
        %v487 = vperm.slane %v461, 0
        %v489 = vmul.f32 %v485, %v487
        %v491 = vperm.slane %v462, 0
        %v493 = vadd.f32 %v489, %v491
        %s494 = scalar_lea.vmem %s3, 128
        %v495 = vld [vmem:[%s494] sm:$0xff]
        %v496 = vld [vmem:[%s494 + $0x8] sm:$0xff]
        %v497 = vld [vmem:[%s494 + $0x10] sm:$0xff]
        %v498 = vld [vmem:[%s494 + $0x18] sm:$0xff]
        %v499 = vld [vmem:[%s494 + $0x20] sm:$0xff]
        %v500 = vld [vmem:[%s494 + $0x28] sm:$0xff]
        %v501 = vld [vmem:[%s494 + $0x30] sm:$0xff]
        %v502 = vld [vmem:[%s494 + $0x38] sm:$0xff]
        %v503 = vld [vmem:[%s494 + $0x40] sm:$0xff]
        %v504 = vld [vmem:[%s494 + $0x48] sm:$0xff]
        %v505 = vld [vmem:[%s494 + $0x50] sm:$0xff]
        %v506 = vld [vmem:[%s494 + $0x58] sm:$0xff]
        %v507 = vld [vmem:[%s494 + $0x60] sm:$0xff]
        %v508 = vld [vmem:[%s494 + $0x68] sm:$0xff]
        %v509 = vld [vmem:[%s494 + $0x70] sm:$0xff]
        %v510 = vld [vmem:[%s494 + $0x78] sm:$0xff]
        %s511 = scalar_lea.vmem %s4, 1
        %v512 = vld [vmem:[%s511] sm:$0x1]
        %v514 = vperm.slane %v512, 0
        %516 = vmatpush.msra.mxu0 %v510
        %517 = vmatpush.msra.mxu0 %v509
        %518 = vmatpush.msra.mxu0 %v508
        %519 = vmatpush.msra.mxu0 %v507
        %520 = vmatpush.msra.mxu0 %v506
        %521 = vmatpush.msra.mxu0 %v505
        %522 = vmatpush.msra.mxu0 %v504
        %523 = vmatpush.msra.mxu0 %v503
        %524 = vmatpush.msra.mxu0 %v502
        %525 = vmatpush.msra.mxu0 %v501
        %526 = vmatpush.msra.mxu0 %v500
        %527 = vmatpush.msra.mxu0 %v499
        %528 = vmatpush.msra.mxu0 %v498
        %529 = vmatpush.msra.mxu0 %v497
        %530 = vmatpush.msra.mxu0 %v496
        %531 = vmatpush.msra.mxu0 %v495
        %532 = vmatmul.f32.gmra.mxu0 %v493
        %v533 = vpop.f32.mrf.mxu0
        %v534 = vadd.f32 %v514, %v533
        %535 = vdwg.mxu0
        %v536 = vtanh.pop %v534
        %s537 = scalar_lea.vmem %s5, 1
        %v538 = vld [vmem:[%s537] sm:$0x1]
        %s539 = scalar_lea.vmem %s6, 1
        %v540 = vld [vmem:[%s539] sm:$0x1]
        %541 = vadd.xlane.f32.xlu0 %v536
        %v542 = vpop.xlane.xlu0 %541
        %v543 = vmul.f32 %v542, 0.03125
        %v544 = vsub.f32 %v536, %v543
        %v545 = vsel %vm468, %v544, 0.0
        %v546 = vmul.f32 %v545, %v545
        %547 = vadd.xlane.f32.xlu0 %v546
        %v548 = vpop.xlane.xlu0 %547
        %v549 = vmul.f32 %v548, 0.03125
        %v550 = vadd.f32 %v549, 1e-05
        %v551 = vrsqrt.pop %v550
        %v552 = vmul.f32 %v551, %v550
        %v553 = vmul.f32 %v552, %v551
        %v554 = vmul.f32 0.5, %v553
        %v555 = vsub.f32 1.5, %v554
        %v556 = vmul.f32 %v551, %v555
        %vm557 = vweird.f32 %v550
        %vm558 = vweird.f32 %v551
        %vm559 = vmor %vm557, %vm558
        %v560 = vsel %vm559, %v551, %v556
        %v561 = vmul.f32 %v544, %v560
        %v563 = vperm.slane %v538, 0
        %v565 = vmul.f32 %v561, %v563
        %v567 = vperm.slane %v540, 0
        %v569 = vadd.f32 %v565, %v567
        %v570 = vadd.f32 %v418, %v569
        %v571 = vtanh.pop %v570
        %v572 = vld [vmem:[%s7] sm:$0x1]
        %v573 = vld [vmem:[%s8] sm:$0x1]
        %574 = vadd.xlane.f32.xlu0 %v571
        %v575 = vpop.xlane.xlu0 %574
        %v576 = vmul.f32 %v575, 0.03125
        %v577 = vsub.f32 %v571, %v576
        %v578 = vsel %vm468, %v577, 0.0
        %v579 = vmul.f32 %v578, %v578
        %580 = vadd.xlane.f32.xlu0 %v579
        %v581 = vpop.xlane.xlu0 %580
        %v582 = vmul.f32 %v581, 0.03125
        %v583 = vadd.f32 %v582, 1e-05
        %v584 = vrsqrt.pop %v583
        %v585 = vmul.f32 %v584, %v583
        %v586 = vmul.f32 %v585, %v584
        %v587 = vmul.f32 0.5, %v586
        %v588 = vsub.f32 1.5, %v587
        %v589 = vmul.f32 %v584, %v588
        %vm590 = vweird.f32 %v583
        %vm591 = vweird.f32 %v584
        %vm592 = vmor %vm590, %vm591
        %v593 = vsel %vm592, %v584, %v589
        %v594 = vmul.f32 %v577, %v593
        %v596 = vperm.slane %v572, 0
        %v598 = vmul.f32 %v594, %v596
        %v600 = vperm.slane %v573, 0
        %v602 = vadd.f32 %v598, %v600
        %s603 = scalar_lea.vmem %s3, 256
        %v604 = vld [vmem:[%s603] sm:$0xff]
        %v605 = vld [vmem:[%s603 + $0x8] sm:$0xff]
        %v606 = vld [vmem:[%s603 + $0x10] sm:$0xff]
        %v607 = vld [vmem:[%s603 + $0x18] sm:$0xff]
        %v608 = vld [vmem:[%s603 + $0x20] sm:$0xff]
        %v609 = vld [vmem:[%s603 + $0x28] sm:$0xff]
        %v610 = vld [vmem:[%s603 + $0x30] sm:$0xff]
        %v611 = vld [vmem:[%s603 + $0x38] sm:$0xff]
        %v612 = vld [vmem:[%s603 + $0x40] sm:$0xff]
        %v613 = vld [vmem:[%s603 + $0x48] sm:$0xff]
        %v614 = vld [vmem:[%s603 + $0x50] sm:$0xff]
        %v615 = vld [vmem:[%s603 + $0x58] sm:$0xff]
        %v616 = vld [vmem:[%s603 + $0x60] sm:$0xff]
        %v617 = vld [vmem:[%s603 + $0x68] sm:$0xff]
        %v618 = vld [vmem:[%s603 + $0x70] sm:$0xff]
        %v619 = vld [vmem:[%s603 + $0x78] sm:$0xff]
        %s620 = scalar_lea.vmem %s4, 2
        %v621 = vld [vmem:[%s620] sm:$0x1]
        %v623 = vperm.slane %v621, 0
        %625 = vmatpush.msra.mxu0 %v619
        %626 = vmatpush.msra.mxu0 %v618
        %627 = vmatpush.msra.mxu0 %v617
        %628 = vmatpush.msra.mxu0 %v616
        %629 = vmatpush.msra.mxu0 %v615
        %630 = vmatpush.msra.mxu0 %v614
        %631 = vmatpush.msra.mxu0 %v613
        %632 = vmatpush.msra.mxu0 %v612
        %633 = vmatpush.msra.mxu0 %v611
        %634 = vmatpush.msra.mxu0 %v610
        %635 = vmatpush.msra.mxu0 %v609
        %636 = vmatpush.msra.mxu0 %v608
        %637 = vmatpush.msra.mxu0 %v607
        %638 = vmatpush.msra.mxu0 %v606
        %639 = vmatpush.msra.mxu0 %v605
        %640 = vmatpush.msra.mxu0 %v604
        %641 = vmatmul.f32.gmra.mxu0 %v602
        %v642 = vpop.f32.mrf.mxu0
        %v643 = vadd.f32 %v623, %v642
        %644 = vdwg.mxu0
        %v645 = vtanh.pop %v643
        %s646 = scalar_lea.vmem %s5, 2
        %v647 = vld [vmem:[%s646] sm:$0x1]
        %s648 = scalar_lea.vmem %s6, 2
        %v649 = vld [vmem:[%s648] sm:$0x1]
        %650 = vadd.xlane.f32.xlu0 %v645
        %v651 = vpop.xlane.xlu0 %650
        %v652 = vmul.f32 %v651, 0.03125
        %v653 = vsub.f32 %v645, %v652
        %v654 = vsel %vm468, %v653, 0.0
        %v655 = vmul.f32 %v654, %v654
        %656 = vadd.xlane.f32.xlu0 %v655
        %v657 = vpop.xlane.xlu0 %656
        %v658 = vmul.f32 %v657, 0.03125
        %v659 = vadd.f32 %v658, 1e-05
        %v660 = vrsqrt.pop %v659
        %v661 = vmul.f32 %v660, %v659
        %v662 = vmul.f32 %v661, %v660
        %v663 = vmul.f32 0.5, %v662
        %v664 = vsub.f32 1.5, %v663
        %v665 = vmul.f32 %v660, %v664
        %vm666 = vweird.f32 %v659
        %vm667 = vweird.f32 %v660
        %vm668 = vmor %vm666, %vm667
        %v669 = vsel %vm668, %v660, %v665
        %v670 = vmul.f32 %v653, %v669
        %v672 = vperm.slane %v647, 0
        %v674 = vmul.f32 %v670, %v672
        %v676 = vperm.slane %v649, 0
        %v678 = vadd.f32 %v674, %v676
        %s679 = scalar_lea.vmem %s3, 384
        %v680 = vld [vmem:[%s679] sm:$0xff]
        %v681 = vld [vmem:[%s679 + $0x8] sm:$0xff]
        %v682 = vld [vmem:[%s679 + $0x10] sm:$0xff]
        %v683 = vld [vmem:[%s679 + $0x18] sm:$0xff]
        %v684 = vld [vmem:[%s679 + $0x20] sm:$0xff]
        %v685 = vld [vmem:[%s679 + $0x28] sm:$0xff]
        %v686 = vld [vmem:[%s679 + $0x30] sm:$0xff]
        %v687 = vld [vmem:[%s679 + $0x38] sm:$0xff]
        %v688 = vld [vmem:[%s679 + $0x40] sm:$0xff]
        %v689 = vld [vmem:[%s679 + $0x48] sm:$0xff]
        %v690 = vld [vmem:[%s679 + $0x50] sm:$0xff]
        %v691 = vld [vmem:[%s679 + $0x58] sm:$0xff]
        %v692 = vld [vmem:[%s679 + $0x60] sm:$0xff]
        %v693 = vld [vmem:[%s679 + $0x68] sm:$0xff]
        %v694 = vld [vmem:[%s679 + $0x70] sm:$0xff]
        %v695 = vld [vmem:[%s679 + $0x78] sm:$0xff]
        %s696 = scalar_lea.vmem %s4, 3
        %v697 = vld [vmem:[%s696] sm:$0x1]
        %v699 = vperm.slane %v697, 0
        %701 = vmatpush.msra.mxu0 %v695
        %702 = vmatpush.msra.mxu0 %v694
        %703 = vmatpush.msra.mxu0 %v693
        %704 = vmatpush.msra.mxu0 %v692
        %705 = vmatpush.msra.mxu0 %v691
        %706 = vmatpush.msra.mxu0 %v690
        %707 = vmatpush.msra.mxu0 %v689
        %708 = vmatpush.msra.mxu0 %v688
        %709 = vmatpush.msra.mxu0 %v687
        %710 = vmatpush.msra.mxu0 %v686
        %711 = vmatpush.msra.mxu0 %v685
        %712 = vmatpush.msra.mxu0 %v684
        %713 = vmatpush.msra.mxu0 %v683
        %714 = vmatpush.msra.mxu0 %v682
        %715 = vmatpush.msra.mxu0 %v681
        %716 = vmatpush.msra.mxu0 %v680
        %717 = vmatmul.f32.gmra.mxu0 %v678
        %v718 = vpop.f32.mrf.mxu0
        %v719 = vadd.f32 %v699, %v718
        %720 = vdwg.mxu0
        %v721 = vtanh.pop %v719
        %s722 = scalar_lea.vmem %s5, 3
        %v723 = vld [vmem:[%s722] sm:$0x1]
        %s724 = scalar_lea.vmem %s6, 3
        %v725 = vld [vmem:[%s724] sm:$0x1]
        %726 = vadd.xlane.f32.xlu0 %v721
        %v727 = vpop.xlane.xlu0 %726
        %v728 = vmul.f32 %v727, 0.03125
        %v729 = vsub.f32 %v721, %v728
        %v730 = vsel %vm468, %v729, 0.0
        %v731 = vmul.f32 %v730, %v730
        %732 = vadd.xlane.f32.xlu0 %v731
        %v733 = vpop.xlane.xlu0 %732
        %v734 = vmul.f32 %v733, 0.03125
        %v735 = vadd.f32 %v734, 1e-05
        %v736 = vrsqrt.pop %v735
        %v737 = vmul.f32 %v736, %v735
        %v738 = vmul.f32 %v737, %v736
        %v739 = vmul.f32 0.5, %v738
        %v740 = vsub.f32 1.5, %v739
        %v741 = vmul.f32 %v736, %v740
        %vm742 = vweird.f32 %v735
        %vm743 = vweird.f32 %v736
        %vm744 = vmor %vm742, %vm743
        %v745 = vsel %vm744, %v736, %v741
        %v746 = vmul.f32 %v729, %v745
        %v748 = vperm.slane %v723, 0
        %v750 = vmul.f32 %v746, %v748
        %v752 = vperm.slane %v725, 0
        %v754 = vadd.f32 %v750, %v752
        %v755 = vadd.f32 %v602, %v754
        %v756 = vtanh.pop %v755
        %s757 = scalar_lea.vmem %s7, 1
        %v758 = vld [vmem:[%s757] sm:$0x1]
        %s759 = scalar_lea.vmem %s8, 1
        %v760 = vld [vmem:[%s759] sm:$0x1]
        %761 = vadd.xlane.f32.xlu0 %v756
        %v762 = vpop.xlane.xlu0 %761
        %v763 = vmul.f32 %v762, 0.03125
        %v764 = vsub.f32 %v756, %v763
        %v765 = vsel %vm468, %v764, 0.0
        %v766 = vmul.f32 %v765, %v765
        %767 = vadd.xlane.f32.xlu0 %v766
        %v768 = vpop.xlane.xlu0 %767
        %v769 = vmul.f32 %v768, 0.03125
        %v770 = vadd.f32 %v769, 1e-05
        %v771 = vrsqrt.pop %v770
        %v772 = vmul.f32 %v771, %v770
        %v773 = vmul.f32 %v772, %v771
        %v774 = vmul.f32 0.5, %v773
        %v775 = vsub.f32 1.5, %v774
        %v776 = vmul.f32 %v771, %v775
        %vm777 = vweird.f32 %v770
        %vm778 = vweird.f32 %v771
        %vm779 = vmor %vm777, %vm778
        %v780 = vsel %vm779, %v771, %v776
        %v781 = vmul.f32 %v764, %v780
        %v783 = vperm.slane %v758, 0
        %v785 = vmul.f32 %v781, %v783
        %v787 = vperm.slane %v760, 0
        %v789 = vadd.f32 %v785, %v787
        %v790 = vld [vmem:[%s9] sm:$0xff]
        %v791 = vld [vmem:[%s9 + $0x8] sm:$0xff]
        %v792 = vld [vmem:[%s9 + $0x10] sm:$0xff]
        %v793 = vld [vmem:[%s9 + $0x18] sm:$0xff]
        %v794 = vld [vmem:[%s9 + $0x20] sm:$0xff]
        %v795 = vld [vmem:[%s9 + $0x28] sm:$0xff]
        %v796 = vld [vmem:[%s9 + $0x30] sm:$0xff]
        %v797 = vld [vmem:[%s9 + $0x38] sm:$0xff]
        %v798 = vld [vmem:[%s9 + $0x40] sm:$0xff]
        %v799 = vld [vmem:[%s9 + $0x48] sm:$0xff]
        %v800 = vld [vmem:[%s9 + $0x50] sm:$0xff]
        %v801 = vld [vmem:[%s9 + $0x58] sm:$0xff]
        %v802 = vld [vmem:[%s9 + $0x60] sm:$0xff]
        %v803 = vld [vmem:[%s9 + $0x68] sm:$0xff]
        %v804 = vld [vmem:[%s9 + $0x70] sm:$0xff]
        %v805 = vld [vmem:[%s9 + $0x78] sm:$0xff]
        %v806 = vld [vmem:[%s10] sm:$0x1]
        %v808 = vperm.slane %v806, 0
        %810 = vmatpush.msra.mxu0 %v805
        %811 = vmatpush.msra.mxu0 %v804
        %812 = vmatpush.msra.mxu0 %v803
        %813 = vmatpush.msra.mxu0 %v802
        %814 = vmatpush.msra.mxu0 %v801
        %815 = vmatpush.msra.mxu0 %v800
        %816 = vmatpush.msra.mxu0 %v799
        %817 = vmatpush.msra.mxu0 %v798
        %818 = vmatpush.msra.mxu0 %v797
        %819 = vmatpush.msra.mxu0 %v796
        %820 = vmatpush.msra.mxu0 %v795
        %821 = vmatpush.msra.mxu0 %v794
        %822 = vmatpush.msra.mxu0 %v793
        %823 = vmatpush.msra.mxu0 %v792
        %824 = vmatpush.msra.mxu0 %v791
        %825 = vmatpush.msra.mxu0 %v790
        %826 = vmatmul.f32.gmra.mxu0 %v789
        %v827 = vpop.f32.mrf.mxu0
        %v828 = vadd.f32 %v808, %v827
        %829 = vdwg.mxu0
        %830 = vst [vmem:[%s377] sm:$0xff] %v828
        %s831 = sand.u32 %s269, 1
        %s832 = scalar_lea.sflag [#allocation3], %s831
        %s833 = sand.u32 %s269, 1
        %s834 = smul.addr %s833, 8
        %s835 = scalar_lea.vmem [#allocation2], %s834
        // Predicated region
        $region65: #{_forward_jit.1} parent=63 // pred_check
          %p836 = pneg %p279
        $region66: #{_forward_jit.1} parent=63 // pred_check_branch
          %838 = sbr.rel (%p836) target = $region68
        $region67: #{_forward_jit.1} parent=63 // pred_region
          %840 = vsyncadd %s832, 0
          %s841 = smul.addr %s25, 8
          %s842 = scalar_lea.hbm %s11, %s841
          %s844 = sshll.u32 %s835, 4
          %s845 = int_to_ptr.vmem [resolvable:$true] %s844
          %s846 = sshll.u32 %s842, 4
          %s847 = int_to_ptr.hbm [resolvable:$true] %s846
          %849 = dma.vmem_to_hbm [thread:$0]  %s845, 128, %s847, %s832
        $region68: #{_forward_jit.1} parent=63 // pred_fallthru
          _
      $region64: #{_forward_jit.1} parent=5 // pred_fallthru
        _
      %p850 = scmp.le.s32.totalorder 2, %s20
      // Predicated region
      $region69: #{_forward_jit.1} parent=5 // pred_check
        %p851 = pneg %p850
      $region70: #{_forward_jit.1} parent=5 // pred_check_branch
        %853 = sbr.rel (%p851) target = $region72
      $region71: #{_forward_jit.1} parent=5 // pred_region
        %s854 = ssub.s32 %s20, 2
        // Predicated region
        $region73: #{_forward_jit.1} parent=71 // pred_check
          %p855 = pneg %p285
        $region74: #{_forward_jit.1} parent=71 // pred_check_branch
          %857 = sbr.rel (%p855) target = $region76
        $region75: #{_forward_jit.1} parent=71 // pred_region
          %s858 = sand.u32 %s270, 1
          %s859 = scalar_lea.sflag [#allocation3], %s858
          %s860 = sand.u32 %s270, 1
          %s861 = smul.addr %s860, 8
          %s862 = scalar_lea.vmem [#allocation2], %s861
          %864 = dma.done %s859, 128
        $region76: #{_forward_jit.1} parent=71 // pred_fallthru
          _
      $region72: #{_forward_jit.1} parent=5 // pred_fallthru
        _
    $region6: #{_forward_jit.1} parent=1 // loop_footer
      %s24 = sadd.s32 1, %s20
    $region7: #{_forward_jit.1} parent=1 // loop_footer_branch
      %19 = sbr.rel target = $region3
    $region8: #{_forward_jit.1} parent=1 // loop_exit
      _
    %865 = vsyncpa [#allocation3], 1
    %s866 = scalar_lea.sflag [#allocation3], 1
    %867 = vsyncpa %s866, 1

</llo_original>
